<compile_context>
chip_gen: v7x
topology: tpu7x:2x2x1
jax: 0.10.0
libtpu: 0.0.40
codegen_flags: <defaults>
</compile_context>

<pallas_src>
import functools

import jax
import jax.numpy as jnp
from jax import lax
from jax.experimental import pallas as pl
from jax.experimental.pallas import tpu as pltpu

# ----------------------------- model config ---------------------------------
CONT_FIELD = 4
CATE_FIELD = 4
COMB_FIELD = 4
CATE_CONT_FEATURE = 20
COMB_FEATURE = 16
ORIG_DIM = 32          # orig_embedding_dim
COMB_DIM = 8           # comb_embedding_dim
HIDDEN = [64, 64]      # hidden_dims
NUM_OPS = 3
TAU = 5e-5
SELECTED_PAIRS = [(0, 1), (1, 2), (2, 3), (0, 3)]   # len == comb_field
LN_EPS = 1e-5          # torch.nn.LayerNorm default eps

D_BASE = ORIG_DIM * (CONT_FIELD + CATE_FIELD)       # 256
D_COMB = COMB_FIELD * COMB_DIM                      # 32
D_X = D_BASE + 2 * D_COMB                           # 320 (fused: base|comb|comp)

BATCH = 512
TILE_B = 256   # 2 tiles for B=512 -> both v7x TCs busy; few grid steps everywhere


# ------------------------------ Pallas kernel ----------------------------------
def dnn_cart_kernel(x_ref, w1_ref, w2_ref, p_ref, out_ref):
    # p_ref rows: 0=b1c, 1=b2c, 2=g1, 3=be1, 4=g2, 5=be2, 6=wo_row, 7=[bo,0,...]
    # Layer 1: single fused K=320 dot; weights/bias are pre-centered so the MXU
    # output IS already (h - mean(h)) -- only E[d^2] needs a lane reduction.
    d = jnp.dot(x_ref[...], w1_ref[...],
                preferred_element_type=jnp.float32) + p_ref[0:1, :]
    var = jnp.mean(d * d, axis=-1, keepdims=True)
    h = jnp.maximum(d * lax.rsqrt(var + LN_EPS) * p_ref[2:3, :] + p_ref[3:4, :], 0.0)

    # Layer 2 (same centered-weight LayerNorm trick)
    d = jnp.dot(h.astype(jnp.bfloat16), w2_ref[...],
                preferred_element_type=jnp.float32) + p_ref[1:2, :]
    var = jnp.mean(d * d, axis=-1, keepdims=True)
    h = jnp.maximum(d * lax.rsqrt(var + LN_EPS) * p_ref[4:5, :] + p_ref[5:6, :], 0.0)

    # Output: lane-dense logits (1, tb) = wo_row (1, H) . h (tb, H) contracted on H
    logit = lax.dot_general(
        p_ref[6:7, :].astype(jnp.bfloat16), h.astype(jnp.bfloat16),
        dimension_numbers=(((1,), (1,)), ((), ())),
        preferred_element_type=jnp.float32) + p_ref[7:8, 0:1]
    out_ref[...] = jax.nn.sigmoid(logit)


def run_mlp_pallas(x, w1c, w2c, packed, tb):
    B, D = x.shape
    assert B % tb == 0
    H0, H1 = HIDDEN

    flops = 2 * B * (D * H0 + H0 * H1 + H1)
    bytes_accessed = (x.size * 2 + w1c.size * 2 + w2c.size * 2
                      + packed.size * 4 + B * 4)

    resident = lambda i: (0, 0)   # weights stay VMEM-resident across batch tiles
    out = pl.pallas_call(
        dnn_cart_kernel,
        out_shape=jax.ShapeDtypeStruct((1, B), jnp.float32),   # lane-dense row
        grid=(B // tb,),
        in_specs=[
            pl.BlockSpec((tb, D), lambda i: (i, 0)),     # activations: streamed
            pl.BlockSpec((D, H0), resident),             # w1 fused+centered (320,64)
            pl.BlockSpec((H0, H1), resident),            # w2 centered (64,64)
            pl.BlockSpec((8, H1), resident),             # packed small params (8,64)
        ],
        out_specs=pl.BlockSpec((1, tb), lambda i: (0, i)),
        compiler_params=pltpu.CompilerParams(
            dimension_semantics=("parallel",)),
        cost_estimate=pl.CostEstimate(
            flops=flops, transcendentals=3 * B, bytes_accessed=bytes_accessed),
    )(x, w1c, w2c, packed)
    return out.reshape(B, 1)


# ---------------------------- parameter setup --------------------------------
def init_params(key):
    ks = jax.random.split(key, 10)
    orig_table = jax.random.normal(ks[0], (CATE_CONT_FEATURE, ORIG_DIM), jnp.float32)
    comb_table = jax.random.normal(ks[1], (COMB_FEATURE, COMB_DIM), jnp.float32)
    add_table = jax.random.normal(ks[2], (CATE_CONT_FEATURE, COMB_DIM), jnp.float32)
    # xavier_normal_ for the architecture parameters (comb_field, num_ops)
    xav_std = (2.0 / (COMB_FIELD + NUM_OPS)) ** 0.5
    arch = jax.random.normal(ks[3], (COMB_FIELD, NUM_OPS), jnp.float32) * xav_std

    w1 = jax.random.normal(ks[4], (D_BASE + D_COMB, HIDDEN[0]), jnp.float32) * 0.05
    b1 = jax.random.normal(ks[5], (1, HIDDEN[0]), jnp.float32) * 0.05
    w2 = jax.random.normal(ks[6], (HIDDEN[0], HIDDEN[1]), jnp.float32) * 0.05
    b2 = jax.random.normal(ks[7], (1, HIDDEN[1]), jnp.float32) * 0.05
    wo = jax.random.normal(ks[8], (HIDDEN[1], 1), jnp.float32) * 0.05
    bo = jax.random.normal(ks[9], (1, 1), jnp.float32) * 0.05
    # LayerNorm affine params: torch defaults (ones / zeros)
    g1 = jnp.ones((1, HIDDEN[0]), jnp.float32)
    be1 = jnp.zeros((1, HIDDEN[0]), jnp.float32)
    g2 = jnp.ones((1, HIDDEN[1]), jnp.float32)
    be2 = jnp.zeros((1, HIDDEN[1]), jnp.float32)

    embeds = (orig_table, comb_table, add_table, arch)
    mlp = (w1[:D_BASE], w1[D_BASE:], b1, g1, be1, w2, b2, g2, be2, wo, bo)
    return embeds, mlp, w1


# ------------------------------ forward glue ----------------------------------
def prepare_inputs(conts, cates, combs, embeds, step=0):
    # TODO(synk): fold this into the kernel via PrefetchScalarGridSpec
    # (cates/combs in SMEM + VMEM-resident tables) to remove the last XLA glue.
    orig_table, comb_table, add_table, arch = embeds
    B = conts.shape[0]

    # temperature-scaled softmax over the architecture parameters
    # (step is a static Python int; use jnp.maximum if it ever becomes traced)
    t = max(0.01, 1.0 - TAU * step)
    alpha = jax.nn.softmax(arch / t, axis=1)                     # (COMB_FIELD, 3)

    cont_emb = orig_table[:CONT_FIELD][None, :, :] * conts[:, :, None]  # (B,CF,OD)
    cate_emb = orig_table[cates]                                 # (B, CATE_FIELD, OD)
    comb_emb = comb_table[combs]                                 # (B, COMB_FIELD, CD)
    add_emb = add_table[cates]                                   # (B, CATE_FIELD, CD)

    pi = jnp.array([p[0] for p in SELECTED_PAIRS], jnp.int32)
    pj = jnp.array([p[1] for p in SELECTED_PAIRS], jnp.int32)
    comp_comb = add_emb[:, pi] * add_emb[:, pj]                  # (B, COMB_FIELD, CD)

    x = jnp.concatenate(
        [cont_emb.reshape(B, -1), cate_emb.reshape(B, -1),
         comb_emb.reshape(B, -1), comp_comb.reshape(B, -1)], axis=1)   # (B, D_X)

    a0 = jnp.repeat(alpha[:, 0], COMB_DIM)                       # (D_COMB,)
    a1 = jnp.repeat(alpha[:, 1], COMB_DIM)                       # (D_COMB,)
    return x, a0, a1


def build_kernel_inputs(conts, cates, combs, embeds, mlp, step=0):
    x, a0, a1 = prepare_inputs(conts, cates, combs, embeds, step)
    (w1a, w1b, b1, g1, be1, w2, b2, g2, be2, wo, bo) = mlp
    H0, H1 = HIDDEN

    # Fold the (batch-independent) alpha mix + K=32 side matmul into one K=320 weight:
    #   base @ w1a + (comb*a0 + comp*a1) @ w1b == [base|comb|comp] @ [w1a; a0*w1b; a1*w1b]
    w1f = jnp.concatenate([w1a, w1b * a0[:, None], w1b * a1[:, None]], axis=0)

    # Pre-center weights & biases column-wise so the LayerNorm mean subtraction is
    # absorbed by the MXU:  h - mean(h) = x @ (W - rowmean(W)) + (b - mean(b)).
    w1c = w1f - jnp.mean(w1f, axis=1, keepdims=True)
    w2c = w2 - jnp.mean(w2, axis=1, keepdims=True)
    b1c = b1 - jnp.mean(b1, axis=1, keepdims=True)
    b2c = b2 - jnp.mean(b2, axis=1, keepdims=True)

    PW = H1   # packed width (HIDDEN[0] == HIDDEN[1] == 64)

    def row(v):
        v = v.reshape(1, -1)
        return jnp.pad(v, ((0, 0), (0, PW - v.shape[1])))

    packed = jnp.concatenate(
        [row(b1c), row(b2c), row(g1), row(be1), row(g2), row(be2),
         row(wo), row(bo)], axis=0).astype(jnp.float32)          # (8, 64) f32

    return (x.astype(jnp.bfloat16), w1c.astype(jnp.bfloat16),
            w2c.astype(jnp.bfloat16), packed)


@functools.partial(jax.jit, static_argnames=("step", "tb"))
def forward_pallas(conts, cates, combs, embeds, mlp, step=0, tb=TILE_B):
    x, w1c, w2c, packed = build_kernel_inputs(conts, cates, combs, embeds, mlp, step)
    B = x.shape[0]
    Bp = ((B + tb - 1) // tb) * tb
    if Bp != B:
        x = jnp.pad(x, ((0, Bp - B), (0, 0)))
    out = run_mlp_pallas(x, w1c, w2c, packed, tb)
    return out[:B]


# -------------------------- pure-JAX references --------------------------------
def forward_reference_mirrored(conts, cates, combs, embeds, mlp, step=0):
    # Same mixed-precision math as the kernel (bf16 MXU operands, centered
    # weights, f32 everything else).
    x, w1c, w2c, p = build_kernel_inputs(conts, cates, combs, embeds, mlp, step)

    def ln_relu_centered(d, g, b):
        var = jnp.mean(d * d, axis=-1, keepdims=True)
        return jnp.maximum(d * lax.rsqrt(var + LN_EPS) * g + b, 0.0)

    d = jnp.dot(x, w1c, preferred_element_type=jnp.float32) + p[0:1, :]
    h = ln_relu_centered(d, p[2:3, :], p[3:4, :])
    d = jnp.dot(h.astype(jnp.bfloat16), w2c, preferred_element_type=jnp.float32) + p[1:2, :]
    h = ln_relu_centered(d, p[4:5, :], p[5:6, :])
    logit = jnp.dot(h.astype(jnp.bfloat16), p[6:7, :].astype(jnp.bfloat16).T,
                    preferred_element_type=jnp.float32) + p[7:8, 0:1]
    return jax.nn.sigmoid(logit)


def forward_reference_f32(conts, cates, combs, embeds, w1_full, mlp, step=0):
    # Full-f32 PyTorch-semantics reference (alpha mix elementwise, concatenated
    # W1, standard LayerNorm mean/var).
    x, a0, a1 = prepare_inputs(conts, cates, combs, embeds, step)
    (_, _, b1, g1, be1, w2, b2, g2, be2, wo, bo) = mlp
    base = x[:, :D_BASE]
    comb = x[:, D_BASE:D_BASE + D_COMB]
    comp = x[:, D_BASE + D_COMB:]
    final_comb = comb * a0[None, :] + comp * a1[None, :]   # + 0 * alpha2
    X = jnp.concatenate([base, final_comb], axis=1)

    def ln_relu(h, g, b):
        mu = jnp.mean(h, axis=-1, keepdims=True)
        var = jnp.mean((h - mu) ** 2, axis=-1, keepdims=True)
        return jnp.maximum((h - mu) / jnp.sqrt(var + LN_EPS) * g + b, 0.0)

    h = ln_relu(X @ w1_full + b1, g1, be1)
    h = ln_relu(h @ w2 + b2, g2, be2)
    return jax.nn.sigmoid(h @ wo + bo)


# ----------------------------------- main -------------------------------------
if __name__ == "__main__":
    key = jax.random.PRNGKey(0)
    k_param, k_cont, k_cate, k_comb = jax.random.split(key, 4)

    embeds, mlp_params, w1_full = init_params(k_param)

    conts = jax.random.normal(k_cont, (BATCH, CONT_FIELD), jnp.float32)
    cates = jax.random.randint(k_cate, (BATCH, CATE_FIELD), 0, CATE_CONT_FEATURE)
    combs = jax.random.randint(k_comb, (BATCH, COMB_FIELD), 0, COMB_FEATURE)

    out = jax.block_until_ready(
        forward_pallas(conts, cates, combs, embeds, mlp_params, step=0))
    assert out.shape == (BATCH, 1), out.shape

    ref_mixed = jax.block_until_ready(
        forward_reference_mirrored(conts, cates, combs, embeds, mlp_params, step=0))
    assert jnp.allclose(out, ref_mixed, atol=2e-4, rtol=2e-4), (
        float(jnp.max(jnp.abs(out - ref_mixed))))

    ref_f32 = jax.block_until_ready(
        forward_reference_f32(conts, cates, combs, embeds, w1_full, mlp_params, step=0))
    assert jnp.allclose(out, ref_f32, atol=2e-2), (
        float(jnp.max(jnp.abs(out - ref_f32))))

    print("KERNEL_OK")
</pallas_src>

<mosaic_0001>
module attributes {stable_mosaic.version = 11 : i64} {
  func.func @dnn_cart_kernel(%arg0: i32, %arg1: memref<256x320xbf16, #tpu.memory_space<vmem>>, %arg2: memref<320x64xbf16, #tpu.memory_space<vmem>>, %arg3: memref<64x64xbf16, #tpu.memory_space<vmem>>, %arg4: memref<8x64xf32, #tpu.memory_space<vmem>>, %arg5: memref<1x256xf32, #tpu.memory_space<vmem>>) attributes {dimension_semantics = [#tpu.dimension_semantics<parallel>], iteration_bounds = array<i64: 2>, scalar_prefetch = 0 : i64, scratch_operands = 0 : i64, tpu.core_type = #tpu.core_type<tc>, window_params = [{transform_indices = @transform_0, window_bounds = array<i64: 256, 320>}, {pipeline_mode = #tpu.pipeline_mode<synchronous>, transform_indices = @transform_1, window_bounds = array<i64: 320, 64>}, {pipeline_mode = #tpu.pipeline_mode<synchronous>, transform_indices = @transform_2, window_bounds = array<i64: 64, 64>}, {pipeline_mode = #tpu.pipeline_mode<synchronous>, transform_indices = @transform_3, window_bounds = array<i64: 8, 64>}, {transform_indices = @transform_4, window_bounds = array<i64: 1, 256>}]} {
    %c0 = arith.constant 0 : index
    %c0_0 = arith.constant 0 : index
    %0 = vector.load %arg1[%c0, %c0_0] : memref<256x320xbf16, #tpu.memory_space<vmem>>, vector<256x320xbf16>
    %c0_1 = arith.constant 0 : index
    %c0_2 = arith.constant 0 : index
    %1 = vector.load %arg2[%c0_1, %c0_2] : memref<320x64xbf16, #tpu.memory_space<vmem>>, vector<320x64xbf16>
    %cst = arith.constant dense<0.000000e+00> : vector<256x64xf32>
    %2 = tpu.matmul %0, %1, %cst {dimension_numbers = #tpu.dot_dimension_numbers<[1], [0], [0], [1], [0, 0, 1, 1], [], []>} : vector<256x320xbf16>, vector<320x64xbf16>, vector<256x64xf32> -> vector<256x64xf32>
    %c0_3 = arith.constant 0 : index
    %c0_4 = arith.constant 0 : index
    %3 = vector.load %arg4[%c0_3, %c0_4] : memref<8x64xf32, #tpu.memory_space<vmem>>, vector<1x64xf32>
    %4 = vector.broadcast %3 : vector<1x64xf32> to vector<256x64xf32>
    %5 = arith.addf %2, %4 : vector<256x64xf32>
    %6 = arith.mulf %5, %5 : vector<256x64xf32>
    %cst_5 = arith.constant dense<0.000000e+00> : vector<256xf32>
    %7 = vector.multi_reduction <add>, %6, %cst_5 [1] : vector<256x64xf32> to vector<256xf32>
    %8 = vector.shape_cast %7 : vector<256xf32> to vector<256x1xf32>
    %cst_6 = arith.constant 6.400000e+01 : f32
    %9 = vector.broadcast %cst_6 : f32 to vector<256x1xf32>
    %10 = arith.divf %8, %9 : vector<256x1xf32>
    %cst_7 = arith.constant 9.99999974E-6 : f32
    %11 = vector.broadcast %cst_7 : f32 to vector<256x1xf32>
    %12 = arith.addf %10, %11 : vector<256x1xf32>
    %13 = math.rsqrt %12 : vector<256x1xf32>
    %14 = vector.broadcast %13 : vector<256x1xf32> to vector<256x64xf32>
    %15 = arith.mulf %5, %14 : vector<256x64xf32>
    %c2 = arith.constant 2 : index
    %c0_8 = arith.constant 0 : index
    %16 = vector.load %arg4[%c2, %c0_8] : memref<8x64xf32, #tpu.memory_space<vmem>>, vector<1x64xf32>
    %17 = vector.broadcast %16 : vector<1x64xf32> to vector<256x64xf32>
    %18 = arith.mulf %15, %17 : vector<256x64xf32>
    %c3 = arith.constant 3 : index
    %c0_9 = arith.constant 0 : index
    %19 = vector.load %arg4[%c3, %c0_9] : memref<8x64xf32, #tpu.memory_space<vmem>>, vector<1x64xf32>
    %20 = vector.broadcast %19 : vector<1x64xf32> to vector<256x64xf32>
    %21 = arith.addf %18, %20 : vector<256x64xf32>
    %cst_10 = arith.constant 0.000000e+00 : f32
    %22 = vector.broadcast %cst_10 : f32 to vector<256x64xf32>
    %23 = arith.maximumf %21, %22 : vector<256x64xf32>
    %24 = arith.truncf %23 : vector<256x64xf32> to vector<256x64xbf16>
    %c0_11 = arith.constant 0 : index
    %c0_12 = arith.constant 0 : index
    %25 = vector.load %arg3[%c0_11, %c0_12] : memref<64x64xbf16, #tpu.memory_space<vmem>>, vector<64x64xbf16>
    %cst_13 = arith.constant dense<0.000000e+00> : vector<256x64xf32>
    %26 = tpu.matmul %24, %25, %cst_13 {dimension_numbers = #tpu.dot_dimension_numbers<[1], [0], [0], [1], [0, 0, 1, 1], [], []>} : vector<256x64xbf16>, vector<64x64xbf16>, vector<256x64xf32> -> vector<256x64xf32>
    %c1 = arith.constant 1 : index
    %c0_14 = arith.constant 0 : index
    %27 = vector.load %arg4[%c1, %c0_14] : memref<8x64xf32, #tpu.memory_space<vmem>>, vector<1x64xf32>
    %28 = vector.broadcast %27 : vector<1x64xf32> to vector<256x64xf32>
    %29 = arith.addf %26, %28 : vector<256x64xf32>
    %30 = arith.mulf %29, %29 : vector<256x64xf32>
    %cst_15 = arith.constant dense<0.000000e+00> : vector<256xf32>
    %31 = vector.multi_reduction <add>, %30, %cst_15 [1] : vector<256x64xf32> to vector<256xf32>
    %32 = vector.shape_cast %31 : vector<256xf32> to vector<256x1xf32>
    %cst_16 = arith.constant 6.400000e+01 : f32
    %33 = vector.broadcast %cst_16 : f32 to vector<256x1xf32>
    %34 = arith.divf %32, %33 : vector<256x1xf32>
    %cst_17 = arith.constant 9.99999974E-6 : f32
    %35 = vector.broadcast %cst_17 : f32 to vector<256x1xf32>
    %36 = arith.addf %34, %35 : vector<256x1xf32>
    %37 = math.rsqrt %36 : vector<256x1xf32>
    %38 = vector.broadcast %37 : vector<256x1xf32> to vector<256x64xf32>
    %39 = arith.mulf %29, %38 : vector<256x64xf32>
    %c4 = arith.constant 4 : index
    %c0_18 = arith.constant 0 : index
    %40 = vector.load %arg4[%c4, %c0_18] : memref<8x64xf32, #tpu.memory_space<vmem>>, vector<1x64xf32>
    %41 = vector.broadcast %40 : vector<1x64xf32> to vector<256x64xf32>
    %42 = arith.mulf %39, %41 : vector<256x64xf32>
    %c5 = arith.constant 5 : index
    %c0_19 = arith.constant 0 : index
    %43 = vector.load %arg4[%c5, %c0_19] : memref<8x64xf32, #tpu.memory_space<vmem>>, vector<1x64xf32>
    %44 = vector.broadcast %43 : vector<1x64xf32> to vector<256x64xf32>
    %45 = arith.addf %42, %44 : vector<256x64xf32>
    %cst_20 = arith.constant 0.000000e+00 : f32
    %46 = vector.broadcast %cst_20 : f32 to vector<256x64xf32>
    %47 = arith.maximumf %45, %46 : vector<256x64xf32>
    %c6 = arith.constant 6 : index
    %c0_21 = arith.constant 0 : index
    %48 = vector.load %arg4[%c6, %c0_21] : memref<8x64xf32, #tpu.memory_space<vmem>>, vector<1x64xf32>
    %49 = arith.truncf %48 : vector<1x64xf32> to vector<1x64xbf16>
    %50 = arith.truncf %47 : vector<256x64xf32> to vector<256x64xbf16>
    %cst_22 = arith.constant dense<0.000000e+00> : vector<1x256xf32>
    %51 = tpu.matmul %49, %50, %cst_22 {dimension_numbers = #tpu.dot_dimension_numbers<[1], [1], [0], [0], [0, 0, 1, 0], [], []>} : vector<1x64xbf16>, vector<256x64xbf16>, vector<1x256xf32> -> vector<1x256xf32>
    %c7 = arith.constant 7 : index
    %c0_23 = arith.constant 0 : index
    %52 = vector.load %arg4[%c7, %c0_23] : memref<8x64xf32, #tpu.memory_space<vmem>>, vector<1x1xf32>
    %53 = vector.broadcast %52 : vector<1x1xf32> to vector<1x256xf32>
    %54 = arith.addf %51, %53 : vector<1x256xf32>
    %55 = arith.negf %54 : vector<1x256xf32>
    %56 = math.exp %55 : vector<1x256xf32>
    %cst_24 = arith.constant 1.000000e+00 : f32
    %57 = vector.broadcast %cst_24 : f32 to vector<1x256xf32>
    %58 = arith.addf %57, %56 : vector<1x256xf32>
    %59 = arith.divf %57, %58 : vector<1x256xf32>
    %c0_25 = arith.constant 0 : index
    %c0_26 = arith.constant 0 : index
    %60 = vector.load %arg5[%c0_25, %c0_26] : memref<1x256xf32, #tpu.memory_space<vmem>>, vector<1x256xf32>
    tpu.vector_store %arg5[%c0_25, %c0_26], %59 {strides = array<i32>} : memref<1x256xf32, #tpu.memory_space<vmem>>, vector<1x256xf32>,
    return
  }
  func.func @transform_0(%arg0: i32) -> (i32, i32) {
    %c0_i32 = arith.constant 0 : i32
    %c0_i32_0 = arith.constant 0 : i32
    return %arg0, %c0_i32 : i32, i32
  }
  func.func @transform_1(%arg0: i32) -> (i32, i32) {
    %c0_i32 = arith.constant 0 : i32
    %c0_i32_0 = arith.constant 0 : i32
    %c0_i32_1 = arith.constant 0 : i32
    return %c0_i32, %c0_i32_0 : i32, i32
  }
  func.func @transform_2(%arg0: i32) -> (i32, i32) {
    %c0_i32 = arith.constant 0 : i32
    %c0_i32_0 = arith.constant 0 : i32
    %c0_i32_1 = arith.constant 0 : i32
    return %c0_i32, %c0_i32_0 : i32, i32
  }
  func.func @transform_3(%arg0: i32) -> (i32, i32) {
    %c0_i32 = arith.constant 0 : i32
    %c0_i32_0 = arith.constant 0 : i32
    %c0_i32_1 = arith.constant 0 : i32
    return %c0_i32, %c0_i32_0 : i32, i32
  }
  func.func @transform_4(%arg0: i32) -> (i32, i32) {
    %c0_i32 = arith.constant 0 : i32
    %c0_i32_0 = arith.constant 0 : i32
    return %c0_i32, %arg0 : i32, i32
  }
}

</mosaic_0001>

<llo_original>
// kernel: mul.25
$region0: #{mul.25}
  %s0 = inlined_call_operand.vmem [shape: f32[4,8], index: 0, kind: input, shape index: {}]
  %s1 = inlined_call_operand.vmem [shape: f32[32], index: 1, kind: output, shape index: {}]
  $region1: #{mul.25} parent=0
    #allocation0 [shape = 'u8[4096]{0}', space=vmem, size = 0x1000, scoped, tag = 'scoped mem for output reshape']
    #allocation1 [shape = 'u8[4096]{0}', space=vmem, size = 0x1000, scoped, tag = 'scoped mem for input reshape']
    %s3 = sshllo.u32 0, 4
    %v4 = vld [vmem:[%s0] sm:%s3]
    %5 = vst [vmem:[#allocation1] sm:%s3] %v4
    %v6 = vld [vmem:[#allocation1] sm:$0x1]
    %vm7 = vcmask 64512
    %8 = vst.msk [vmem:[#allocation0] sm:$0x1] %vm7, %v6
    %s9 = scalar_lea.vmem [#allocation1], 3
    %v10 = vld [vmem:[%s9] sm:$0x1]
    %11 = vrot.lane.b32.xlu0 %v10, 24
    %v12 = vpop.permute.xlu0 %11
    %vm13 = vcmask 261312
    %14 = vst.msk [vmem:[#allocation0] sm:$0x1] %vm13, %v12
    %s15 = scalar_lea.vmem [#allocation1], 2
    %v16 = vld [vmem:[%s15] sm:$0x1]
    %17 = vrot.lane.b32.xlu0 %v16, 16
    %v18 = vpop.permute.xlu0 %17
    %vm19 = vcmask 195712
    %20 = vst.msk [vmem:[#allocation0] sm:$0x1] %vm19, %v18
    %s21 = scalar_lea.vmem [#allocation1], 1
    %v22 = vld [vmem:[%s21] sm:$0x1]
    %23 = vrot.lane.b32.xlu0 %v22, 8
    %v24 = vpop.permute.xlu0 %23
    %vm25 = vcmask 130112
    %26 = vst.msk [vmem:[#allocation0] sm:$0x1] %vm25, %v24
    %s28 = sshllo.u32 0, 1
    %v30 = vld [vmem:[#allocation0] sm:%s28]
    %s31 = sshllo.u32 0, 1
    %32 = vst [vmem:[%s1] sm:%s31] %v30

// kernel: forward_pallas.1
$region0: #{forward_pallas.1}
  #allocation0 [shape = 'u32[]', space=smem, size = 0x4, offset = 0x4, fixed_abs, tag = 'smem constant byte address 0x4 - core index']
  #allocation1 [shape = 'u32[144,128]{1,0:T(1,128)}', space=vmem, size = 0x12000, scoped, tag = 'internal scratch']
  %s0 = inlined_call_operand.vmem [shape: bf16[512,320], index: 0, kind: input, shape index: {}]
  %s1 = inlined_call_operand.vmem [shape: bf16[320,64], index: 1, kind: input, shape index: {}]
  %s2 = inlined_call_operand.vmem [shape: bf16[64,64], index: 2, kind: input, shape index: {}]
  %s3 = inlined_call_operand.vmem [shape: f32[8,64], index: 3, kind: input, shape index: {}]
  %s4 = inlined_call_operand.hbm [shape: f32[1,512], index: 4, kind: output, shape index: {}]
  %s5 = sld [smem:[#allocation0]]
  $region49: #{forward_pallas.1} parent=0
    _
  %s7 = ssub.s32 1, %s5
  %s8 = scalar_select 0, %s7, %s5
  $region1: #{forward_pallas.1} parent=0
    #allocation2 [shape = 'u8[2048]{0}', space=vmem, size = 0x800, scoped, tag = 'output window, operand 0']
    #allocation3 [shape = 's32[2]{0}', space=sflag, size = 0x8, scoped, tag = 'scoped memory for forward_pallas.1']
    %9 = vsyncpa [#allocation3], 0
    %s10 = scalar_lea.sflag [#allocation3], 1
    %11 = vsyncpa %s10, 0
    loop: start=0, step=1, limit=4
    $region2: #{forward_pallas.1} parent=1 // loop_pre_header
      _
    $region3: #{forward_pallas.1} parent=1 // loop_header
      %s13 = sphi 0, %s17
      %p14 = scmp.ge.s32.totalorder %s13, 4
      %s23 = sphi 0, %s25
      %s26 = sphi 0, %s23
      %s27 = sphi 0, %s26
      %s43 = sphi 0, %s27
      %s47 = sphi 0, %s47
      %s49 = sphi 0, %s47
      %s50 = sphi 0, %s49
      %s64 = sphi 0, %s50
      %s68 = sphi 0, %s68
      %s70 = sphi 0, %s68
      %s71 = sphi 0, %s70
      %s85 = sphi 0, %s71
      %s89 = sphi 0, %s89
      %s91 = sphi 0, %s89
      %s92 = sphi 0, %s91
      %s106 = sphi 0, %s92
      %s112 = sphi 0, %s114
      %s115 = sphi 0, %s112
      %s116 = sphi 0, %s115
      %s132 = sphi 0, %s116
    $region4: #{forward_pallas.1} parent=1 // loop_header_branch
      %16 = sbr.rel (%p14) target = $region8
    $region5: #{forward_pallas.1} parent=1 // loop_body
      %s18 = ssub.s32 %s13, 1
      %s19 = ssub.s32 %s13, 2
      %s20 = sadd.s32 %s13, 1
      %s21 = ssub.s32 %s13, %s20
      %p22 = scmp.eq.s32.totalorder %s21, 0
      %s24 = sadd.s32 %s23, 1
      %s25 = scalar_select %p22, %s23, %s24
      %p28 = pneg %p22
      %p29 = scmp.eq.s32.totalorder %s13, 1
      %p30 = por %p28, %p29
      %p31 = scmp.ne.s32.totalorder %s23, %s26
      %p32 = scmp.eq.s32.totalorder %s13, 0
      %p33 = por %p31, %p32
      %p34 = scmp.ne.s32.totalorder %s23, %s26
      %p35 = scmp.eq.s32.totalorder %s18, 1
      %p36 = por %p34, %p35
      %p37 = scmp.ne.s32.totalorder %s26, %s27
      %p38 = scmp.eq.s32.totalorder %s18, 0
      %p39 = por %p37, %p38
      %p40 = scmp.ne.s32.totalorder %s26, %s27
      %p41 = scmp.eq.s32.totalorder %s19, 1
      %p42 = por %p40, %p41
      %p44 = scmp.ne.s32.totalorder %s27, %s43
      %p45 = scmp.eq.s32.totalorder %s19, 0
      %p46 = por %p44, %p45
      %s48 = sadd.s32 %s47, 1
      %p51 = scmp.eq.s32.totalorder %s13, 1
      %p52 = scmp.ne.s32.totalorder %s47, %s49
      %p53 = scmp.eq.s32.totalorder %s13, 0
      %p54 = por %p52, %p53
      %p55 = scmp.ne.s32.totalorder %s47, %s49
      %p56 = scmp.eq.s32.totalorder %s18, 1
      %p57 = por %p55, %p56
      %p58 = scmp.ne.s32.totalorder %s49, %s50
      %p59 = scmp.eq.s32.totalorder %s18, 0
      %p60 = por %p58, %p59
      %p61 = scmp.ne.s32.totalorder %s49, %s50
      %p62 = scmp.eq.s32.totalorder %s19, 1
      %p63 = por %p61, %p62
      %p65 = scmp.ne.s32.totalorder %s50, %s64
      %p66 = scmp.eq.s32.totalorder %s19, 0
      %p67 = por %p65, %p66
      %s69 = sadd.s32 %s68, 1
      %p72 = scmp.eq.s32.totalorder %s13, 1
      %p73 = scmp.ne.s32.totalorder %s68, %s70
      %p74 = scmp.eq.s32.totalorder %s13, 0
      %p75 = por %p73, %p74
      %p76 = scmp.ne.s32.totalorder %s68, %s70
      %p77 = scmp.eq.s32.totalorder %s18, 1
      %p78 = por %p76, %p77
      %p79 = scmp.ne.s32.totalorder %s70, %s71
      %p80 = scmp.eq.s32.totalorder %s18, 0
      %p81 = por %p79, %p80
      %p82 = scmp.ne.s32.totalorder %s70, %s71
      %p83 = scmp.eq.s32.totalorder %s19, 1
      %p84 = por %p82, %p83
      %p86 = scmp.ne.s32.totalorder %s71, %s85
      %p87 = scmp.eq.s32.totalorder %s19, 0
      %p88 = por %p86, %p87
      %s90 = sadd.s32 %s89, 1
      %p93 = scmp.eq.s32.totalorder %s13, 1
      %p94 = scmp.ne.s32.totalorder %s89, %s91
      %p95 = scmp.eq.s32.totalorder %s13, 0
      %p96 = por %p94, %p95
      %p97 = scmp.ne.s32.totalorder %s89, %s91
      %p98 = scmp.eq.s32.totalorder %s18, 1
      %p99 = por %p97, %p98
      %p100 = scmp.ne.s32.totalorder %s91, %s92
      %p101 = scmp.eq.s32.totalorder %s18, 0
      %p102 = por %p100, %p101
      %p103 = scmp.ne.s32.totalorder %s91, %s92
      %p104 = scmp.eq.s32.totalorder %s19, 1
      %p105 = por %p103, %p104
      %p107 = scmp.ne.s32.totalorder %s92, %s106
      %p108 = scmp.eq.s32.totalorder %s19, 0
      %p109 = por %p107, %p108
      %s110 = ssub.s32 %s13, %s20
      %p111 = scmp.eq.s32.totalorder %s110, 0
      %s113 = sadd.s32 %s112, 1
      %s114 = scalar_select %p111, %s112, %s113
      %p117 = pneg %p111
      %p118 = scmp.eq.s32.totalorder %s13, 1
      %p119 = por %p117, %p118
      %p120 = scmp.ne.s32.totalorder %s112, %s115
      %p121 = scmp.eq.s32.totalorder %s13, 0
      %p122 = por %p120, %p121
      %p123 = scmp.ne.s32.totalorder %s112, %s115
      %p124 = scmp.eq.s32.totalorder %s18, 1
      %p125 = por %p123, %p124
      %p126 = scmp.ne.s32.totalorder %s115, %s116
      %p127 = scmp.eq.s32.totalorder %s18, 0
      %p128 = por %p126, %p127
      %p129 = scmp.ne.s32.totalorder %s115, %s116
      %p130 = scmp.eq.s32.totalorder %s19, 1
      %p131 = por %p129, %p130
      %p133 = scmp.ne.s32.totalorder %s116, %s132
      %p134 = scmp.eq.s32.totalorder %s19, 0
      %p135 = por %p133, %p134
      %p136 = scmp.le.s32.totalorder 1, %s13
      %p137 = scmp.lt.s32.totalorder %s13, 3
      %p138 = pnand %p136, %p137
      %p139 = pneg %p138
      // Predicated region
      $region9: #{forward_pallas.1} parent=5 // pred_check
        _
      $region10: #{forward_pallas.1} parent=5 // pred_check_branch
        %141 = sbr.rel (%p138) target = $region12
      $region11: #{forward_pallas.1} parent=5 // pred_region
        %s142 = ssub.s32 %s13, 1
        // Predicated region
        $region13: #{forward_pallas.1} parent=11 // pred_check
          %p143 = pneg %p60
        $region14: #{forward_pallas.1} parent=11 // pred_check_branch
          %145 = sbr.rel (%p143) target = $region16
        $region15: #{forward_pallas.1} parent=11 // pred_region
          _
        $region16: #{forward_pallas.1} parent=11 // pred_fallthru
          _
        // Predicated region
        $region17: #{forward_pallas.1} parent=11 // pred_check
          %p146 = pneg %p81
        $region18: #{forward_pallas.1} parent=11 // pred_check_branch
          %148 = sbr.rel (%p146) target = $region20
        $region19: #{forward_pallas.1} parent=11 // pred_region
          _
        $region20: #{forward_pallas.1} parent=11 // pred_fallthru
          _
        // Predicated region
        $region21: #{forward_pallas.1} parent=11 // pred_check
          %p149 = pneg %p102
        $region22: #{forward_pallas.1} parent=11 // pred_check_branch
          %151 = sbr.rel (%p149) target = $region24
        $region23: #{forward_pallas.1} parent=11 // pred_region
          _
        $region24: #{forward_pallas.1} parent=11 // pred_fallthru
          _
      $region12: #{forward_pallas.1} parent=5 // pred_fallthru
        _
      %p152 = scmp.lt.s32.totalorder %s13, 2
      // Predicated region
      $region25: #{forward_pallas.1} parent=5 // pred_check
        %p153 = pneg %p152
      $region26: #{forward_pallas.1} parent=5 // pred_check_branch
        %155 = sbr.rel (%p153) target = $region28
      $region27: #{forward_pallas.1} parent=5 // pred_region
        // Predicated region
        $region29: #{forward_pallas.1} parent=27 // pred_check
          %p156 = pneg %p33
        $region30: #{forward_pallas.1} parent=27 // pred_check_branch
          %158 = sbr.rel (%p156) target = $region32
        $region31: #{forward_pallas.1} parent=27 // pred_region
          %s159 = smul.u32 32, %s13
          %p160 = scmp.lt.s32.totalorder %s159, 63
          %s161 = scalar_select %p160, %s159, 63
          %s162 = smul.addr %s161, 3
          %s163 = smul.addr %s162, 4
          %s164 = scalar_lea.vmem %s0, %s163
          %s165 = smul.u32 32, %s13
        $region32: #{forward_pallas.1} parent=27 // pred_fallthru
          _
      $region28: #{forward_pallas.1} parent=5 // pred_fallthru
        _
      %p166 = scmp.le.s32.totalorder 1, %s13
      %p167 = scmp.lt.s32.totalorder %s13, 3
      %p168 = pnand %p166, %p167
      %p169 = pneg %p168
      // Predicated region
      $region33: #{forward_pallas.1} parent=5 // pred_check
        _
      $region34: #{forward_pallas.1} parent=5 // pred_check_branch
        %171 = sbr.rel (%p168) target = $region36
      $region35: #{forward_pallas.1} parent=5 // pred_region
        %s172 = ssub.s32 %s13, 1
        %s173 = smul.u32 32, %s18
        %p174 = scmp.lt.s32.totalorder %s173, 63
        %s175 = scalar_select %p174, %s173, 63
        %s176 = smul.addr %s175, 3
        %s177 = smul.addr %s176, 4
        %s178 = scalar_lea.vmem %s0, %s177
        %p179 = pneg %p39
        %p180 = pneg %p36
        %p181 = pneg %p60
        %p182 = pneg %p57
        %p183 = pneg %p81
        %p184 = pneg %p78
        %p185 = pneg %p102
        %p186 = pneg %p99
        %p187 = pneg %p128
        %p188 = pneg %p125
        %s189 = sand.u32 %s115, 1
        %s190 = scalar_lea.sflag [#allocation3], %s189
        %s191 = sand.u32 %s115, 1
        %s192 = smul.addr %s191, 2
        %s193 = scalar_lea.vmem [#allocation2], %s192
        %s194 = smul.u32 32, %s18
        %p195 = scmp.lt.s32.totalorder %s194, 63
        %s196 = scalar_select %p195, %s194, 63
        %s197 = smul.addr %s196, 3
        %s198 = smul.addr %s197, 4
        %s199 = scalar_lea.vmem %s0, %s198
        %s200 = smul.u32 32, %s18
        %s201 = smul.u32 2, %s18
        %v203 = vld [vmem:[%s199] sm:$0xff]
        %v204 = vld [vmem:[%s199 + $0x8] sm:$0xf]
        %v205 = vld [vmem:[%s199 + $0xc] sm:$0xff]
        %v206 = vld [vmem:[%s199 + $0x14] sm:$0xf]
        %v207 = vld [vmem:[%s199 + $0x18] sm:$0xff]
        %v208 = vld [vmem:[%s199 + $0x20] sm:$0xf]
        %v209 = vld [vmem:[%s199 + $0x24] sm:$0xff]
        %v210 = vld [vmem:[%s199 + $0x2c] sm:$0xf]
        %v211 = vld [vmem:[%s199 + $0x30] sm:$0xff]
        %v212 = vld [vmem:[%s199 + $0x38] sm:$0xf]
        %v213 = vld [vmem:[%s199 + $0x3c] sm:$0xff]
        %v214 = vld [vmem:[%s199 + $0x44] sm:$0xf]
        %v215 = vld [vmem:[%s199 + $0x48] sm:$0xff]
        %v216 = vld [vmem:[%s199 + $0x50] sm:$0xf]
        %v217 = vld [vmem:[%s199 + $0x54] sm:$0xff]
        %v218 = vld [vmem:[%s199 + $0x5c] sm:$0xf]
        %v219 = vld [vmem:[%s199 + $0x60] sm:$0xff]
        %v220 = vld [vmem:[%s199 + $0x68] sm:$0xf]
        %v221 = vld [vmem:[%s199 + $0x6c] sm:$0xff]
        %v222 = vld [vmem:[%s199 + $0x74] sm:$0xf]
        %v223 = vld [vmem:[%s199 + $0x78] sm:$0xff]
        %v224 = vld [vmem:[%s199 + $0x80] sm:$0xf]
        %v225 = vld [vmem:[%s199 + $0x84] sm:$0xff]
        %v226 = vld [vmem:[%s199 + $0x8c] sm:$0xf]
        %v227 = vld [vmem:[%s199 + $0x90] sm:$0xff]
        %v228 = vld [vmem:[%s199 + $0x98] sm:$0xf]
        %v229 = vld [vmem:[%s199 + $0x9c] sm:$0xff]
        %v230 = vld [vmem:[%s199 + $0xa4] sm:$0xf]
        %v231 = vld [vmem:[%s199 + $0xa8] sm:$0xff]
        %v232 = vld [vmem:[%s199 + $0xb0] sm:$0xf]
        %v233 = vld [vmem:[%s199 + $0xb4] sm:$0xff]
        %v234 = vld [vmem:[%s199 + $0xbc] sm:$0xf]
        %v235 = vld [vmem:[%s199 + $0xc0] sm:$0xff]
        %v236 = vld [vmem:[%s199 + $0xc8] sm:$0xf]
        %v237 = vld [vmem:[%s199 + $0xcc] sm:$0xff]
        %v238 = vld [vmem:[%s199 + $0xd4] sm:$0xf]
        %v239 = vld [vmem:[%s199 + $0xd8] sm:$0xff]
        %v240 = vld [vmem:[%s199 + $0xe0] sm:$0xf]
        %v241 = vld [vmem:[%s199 + $0xe4] sm:$0xff]
        %v242 = vld [vmem:[%s199 + $0xec] sm:$0xf]
        %v243 = vld [vmem:[%s199 + $0xf0] sm:$0xff]
        %v244 = vld [vmem:[%s199 + $0xf8] sm:$0xf]
        %v245 = vld [vmem:[%s199 + $0xfc] sm:$0xff]
        %v246 = vld [vmem:[%s199 + $0x104] sm:$0xf]
        %v247 = vld [vmem:[%s199 + $0x108] sm:$0xff]
        %v248 = vld [vmem:[%s199 + $0x110] sm:$0xf]
        %v249 = vld [vmem:[%s199 + $0x114] sm:$0xff]
        %v250 = vld [vmem:[%s199 + $0x11c] sm:$0xf]
        %v251 = vld [vmem:[%s199 + $0x120] sm:$0xff]
        %v252 = vld [vmem:[%s199 + $0x128] sm:$0xf]
        %v253 = vld [vmem:[%s199 + $0x12c] sm:$0xff]
        %v254 = vld [vmem:[%s199 + $0x134] sm:$0xf]
        %v255 = vld [vmem:[%s199 + $0x138] sm:$0xff]
        %v256 = vld [vmem:[%s199 + $0x140] sm:$0xf]
        %v257 = vld [vmem:[%s199 + $0x144] sm:$0xff]
        %v258 = vld [vmem:[%s199 + $0x14c] sm:$0xf]
        %v259 = vld [vmem:[%s199 + $0x150] sm:$0xff]
        %v260 = vld [vmem:[%s199 + $0x158] sm:$0xf]
        %v261 = vld [vmem:[%s199 + $0x15c] sm:$0xff]
        %v262 = vld [vmem:[%s199 + $0x164] sm:$0xf]
        %v263 = vld [vmem:[%s199 + $0x168] sm:$0xff]
        %v264 = vld [vmem:[%s199 + $0x170] sm:$0xf]
        %v265 = vld [vmem:[%s199 + $0x174] sm:$0xff]
        %v266 = vld [vmem:[%s199 + $0x17c] sm:$0xf]
        %v267 = vld [vmem:[%s1] sm:$0xf]
        %v268 = vld [vmem:[%s1 + $0x4] sm:$0xf]
        %v269 = vld [vmem:[%s1 + $0x8] sm:$0xf]
        %v270 = vld [vmem:[%s1 + $0xc] sm:$0xf]
        %v271 = vld [vmem:[%s1 + $0x10] sm:$0xf]
        %v272 = vld [vmem:[%s1 + $0x14] sm:$0xf]
        %v273 = vld [vmem:[%s1 + $0x18] sm:$0xf]
        %v274 = vld [vmem:[%s1 + $0x1c] sm:$0xf]
        %v275 = vld [vmem:[%s1 + $0x20] sm:$0xf]
        %v276 = vld [vmem:[%s1 + $0x24] sm:$0xf]
        %v277 = vld [vmem:[%s1 + $0x28] sm:$0xf]
        %v278 = vld [vmem:[%s1 + $0x2c] sm:$0xf]
        %v279 = vld [vmem:[%s1 + $0x30] sm:$0xf]
        %v280 = vld [vmem:[%s1 + $0x34] sm:$0xf]
        %v281 = vld [vmem:[%s1 + $0x38] sm:$0xf]
        %v282 = vld [vmem:[%s1 + $0x3c] sm:$0xf]
        %v283 = vld [vmem:[%s1 + $0x40] sm:$0xf]
        %v284 = vld [vmem:[%s1 + $0x44] sm:$0xf]
        %v285 = vld [vmem:[%s1 + $0x48] sm:$0xf]
        %v286 = vld [vmem:[%s1 + $0x4c] sm:$0xf]
        %v287 = vld [vmem:[%s1 + $0x50] sm:$0xf]
        %v288 = vld [vmem:[%s1 + $0x54] sm:$0xf]
        %v289 = vld [vmem:[%s1 + $0x58] sm:$0xf]
        %v290 = vld [vmem:[%s1 + $0x5c] sm:$0xf]
        %v291 = vld [vmem:[%s1 + $0x60] sm:$0xf]
        %v292 = vld [vmem:[%s1 + $0x64] sm:$0xf]
        %v293 = vld [vmem:[%s1 + $0x68] sm:$0xf]
        %v294 = vld [vmem:[%s1 + $0x6c] sm:$0xf]
        %v295 = vld [vmem:[%s1 + $0x70] sm:$0xf]
        %v296 = vld [vmem:[%s1 + $0x74] sm:$0xf]
        %v297 = vld [vmem:[%s1 + $0x78] sm:$0xf]
        %v298 = vld [vmem:[%s1 + $0x7c] sm:$0xf]
        %v299 = vld [vmem:[%s1 + $0x80] sm:$0xf]
        %v300 = vld [vmem:[%s1 + $0x84] sm:$0xf]
        %v301 = vld [vmem:[%s1 + $0x88] sm:$0xf]
        %v302 = vld [vmem:[%s1 + $0x8c] sm:$0xf]
        %v303 = vld [vmem:[%s1 + $0x90] sm:$0xf]
        %v304 = vld [vmem:[%s1 + $0x94] sm:$0xf]
        %v305 = vld [vmem:[%s1 + $0x98] sm:$0xf]
        %v306 = vld [vmem:[%s1 + $0x9c] sm:$0xf]
        %v307 = vld [vmem:[%s3] sm:$0x1]
        %v308 = vlaneseq
        %v309 = vshrl.u32 %v308, 7
        %v310 = vsub.s32 0, %v309
        %v311 = vrot.slane %v307, %v310
        %v376 = vunpack.c.l.b16 %v203
        %v377 = vunpack.c.h.b16 %v203
        %v378 = vunpack.c.l.b16 %v204
        %v379 = vunpack.c.l.b16 %v205
        %v380 = vunpack.c.h.b16 %v205
        %v381 = vunpack.c.l.b16 %v206
        %v382 = vunpack.c.l.b16 %v207
        %v383 = vunpack.c.h.b16 %v207
        %v384 = vunpack.c.l.b16 %v208
        %v385 = vunpack.c.l.b16 %v209
        %v386 = vunpack.c.h.b16 %v209
        %v387 = vunpack.c.l.b16 %v210
        %v388 = vunpack.c.l.b16 %v211
        %v389 = vunpack.c.h.b16 %v211
        %v390 = vunpack.c.l.b16 %v212
        %v391 = vunpack.c.l.b16 %v213
        %v392 = vunpack.c.h.b16 %v213
        %v393 = vunpack.c.l.b16 %v214
        %v394 = vunpack.c.l.b16 %v215
        %v395 = vunpack.c.h.b16 %v215
        %v396 = vunpack.c.l.b16 %v216
        %v397 = vunpack.c.l.b16 %v217
        %v398 = vunpack.c.h.b16 %v217
        %v399 = vunpack.c.l.b16 %v218
        %v400 = vunpack.c.l.b16 %v219
        %v401 = vunpack.c.h.b16 %v219
        %v402 = vunpack.c.l.b16 %v220
        %v403 = vunpack.c.l.b16 %v221
        %v404 = vunpack.c.h.b16 %v221
        %v405 = vunpack.c.l.b16 %v222
        %v406 = vunpack.c.l.b16 %v223
        %v407 = vunpack.c.h.b16 %v223
        %v408 = vunpack.c.l.b16 %v224
        %v409 = vunpack.c.l.b16 %v225
        %v410 = vunpack.c.h.b16 %v225
        %v411 = vunpack.c.l.b16 %v226
        %v412 = vunpack.c.l.b16 %v227
        %v413 = vunpack.c.h.b16 %v227
        %v414 = vunpack.c.l.b16 %v228
        %v415 = vunpack.c.l.b16 %v229
        %v416 = vunpack.c.h.b16 %v229
        %v417 = vunpack.c.l.b16 %v230
        %v418 = vunpack.c.l.b16 %v231
        %v419 = vunpack.c.h.b16 %v231
        %v420 = vunpack.c.l.b16 %v232
        %v421 = vunpack.c.l.b16 %v233
        %v422 = vunpack.c.h.b16 %v233
        %v423 = vunpack.c.l.b16 %v234
        %v424 = vunpack.c.l.b16 %v235
        %v425 = vunpack.c.h.b16 %v235
        %v426 = vunpack.c.l.b16 %v236
        %v427 = vunpack.c.l.b16 %v237
        %v428 = vunpack.c.h.b16 %v237
        %v429 = vunpack.c.l.b16 %v238
        %v430 = vunpack.c.l.b16 %v239
        %v431 = vunpack.c.h.b16 %v239
        %v432 = vunpack.c.l.b16 %v240
        %v433 = vunpack.c.l.b16 %v241
        %v434 = vunpack.c.h.b16 %v241
        %v435 = vunpack.c.l.b16 %v242
        %v436 = vunpack.c.l.b16 %v243
        %v437 = vunpack.c.h.b16 %v243
        %v438 = vunpack.c.l.b16 %v244
        %v439 = vunpack.c.l.b16 %v245
        %v440 = vunpack.c.h.b16 %v245
        %v441 = vunpack.c.l.b16 %v246
        %v442 = vunpack.c.l.b16 %v247
        %v443 = vunpack.c.h.b16 %v247
        %v444 = vunpack.c.l.b16 %v248
        %v445 = vunpack.c.l.b16 %v249
        %v446 = vunpack.c.h.b16 %v249
        %v447 = vunpack.c.l.b16 %v250
        %v448 = vunpack.c.l.b16 %v251
        %v449 = vunpack.c.h.b16 %v251
        %v450 = vunpack.c.l.b16 %v252
        %v451 = vunpack.c.l.b16 %v253
        %v452 = vunpack.c.h.b16 %v253
        %v453 = vunpack.c.l.b16 %v254
        %v454 = vunpack.c.l.b16 %v255
        %v455 = vunpack.c.h.b16 %v255
        %v456 = vunpack.c.l.b16 %v256
        %v457 = vunpack.c.l.b16 %v257
        %v458 = vunpack.c.h.b16 %v257
        %v459 = vunpack.c.l.b16 %v258
        %v460 = vunpack.c.l.b16 %v259
        %v461 = vunpack.c.h.b16 %v259
        %v462 = vunpack.c.l.b16 %v260
        %v463 = vunpack.c.l.b16 %v261
        %v464 = vunpack.c.h.b16 %v261
        %v465 = vunpack.c.l.b16 %v262
        %v466 = vunpack.c.l.b16 %v263
        %v467 = vunpack.c.h.b16 %v263
        %v468 = vunpack.c.l.b16 %v264
        %v469 = vunpack.c.l.b16 %v265
        %v470 = vunpack.c.h.b16 %v265
        %v471 = vunpack.c.l.b16 %v266
        %v472 = vpack.c.b16 %v379, %v376
        %v473 = vpack.c.b16 %v380, %v377
        %v474 = vpack.c.b16 %v381, %v378
        %v475 = vpack.c.b16 %v385, %v382
        %v476 = vpack.c.b16 %v386, %v383
        %v477 = vpack.c.b16 %v387, %v384
        %v478 = vpack.c.b16 %v391, %v388
        %v479 = vpack.c.b16 %v392, %v389
        %v480 = vpack.c.b16 %v393, %v390
        %v481 = vpack.c.b16 %v397, %v394
        %v482 = vpack.c.b16 %v398, %v395
        %v483 = vpack.c.b16 %v399, %v396
        %v484 = vpack.c.b16 %v403, %v400
        %v485 = vpack.c.b16 %v404, %v401
        %v486 = vpack.c.b16 %v405, %v402
        %v487 = vpack.c.b16 %v409, %v406
        %v488 = vpack.c.b16 %v410, %v407
        %v489 = vpack.c.b16 %v411, %v408
        %v490 = vpack.c.b16 %v415, %v412
        %v491 = vpack.c.b16 %v416, %v413
        %v492 = vpack.c.b16 %v417, %v414
        %v493 = vpack.c.b16 %v421, %v418
        %v494 = vpack.c.b16 %v422, %v419
        %v495 = vpack.c.b16 %v423, %v420
        %v496 = vpack.c.b16 %v427, %v424
        %v497 = vpack.c.b16 %v428, %v425
        %v498 = vpack.c.b16 %v429, %v426
        %v499 = vpack.c.b16 %v433, %v430
        %v500 = vpack.c.b16 %v434, %v431
        %v501 = vpack.c.b16 %v435, %v432
        %v502 = vpack.c.b16 %v439, %v436
        %v503 = vpack.c.b16 %v440, %v437
        %v504 = vpack.c.b16 %v441, %v438
        %v505 = vpack.c.b16 %v445, %v442
        %v506 = vpack.c.b16 %v446, %v443
        %v507 = vpack.c.b16 %v447, %v444
        %v508 = vpack.c.b16 %v451, %v448
        %v509 = vpack.c.b16 %v452, %v449
        %v510 = vpack.c.b16 %v453, %v450
        %v511 = vpack.c.b16 %v457, %v454
        %v512 = vpack.c.b16 %v458, %v455
        %v513 = vpack.c.b16 %v459, %v456
        %v514 = vpack.c.b16 %v463, %v460
        %v515 = vpack.c.b16 %v464, %v461
        %v516 = vpack.c.b16 %v465, %v462
        %v517 = vpack.c.b16 %v469, %v466
        %v518 = vpack.c.b16 %v470, %v467
        %v519 = vpack.c.b16 %v471, %v468
        %v592 = vunpack.c.l.b16 %v267
        %v593 = vunpack.c.l.b16 %v268
        %v594 = vunpack.c.l.b16 %v269
        %v595 = vunpack.c.l.b16 %v270
        %v596 = vunpack.c.l.b16 %v271
        %v597 = vunpack.c.l.b16 %v272
        %v598 = vunpack.c.l.b16 %v273
        %v599 = vunpack.c.l.b16 %v274
        %v600 = vunpack.c.l.b16 %v275
        %v601 = vunpack.c.l.b16 %v276
        %v602 = vunpack.c.l.b16 %v277
        %v603 = vunpack.c.l.b16 %v278
        %v604 = vunpack.c.l.b16 %v279
        %v605 = vunpack.c.l.b16 %v280
        %v606 = vunpack.c.l.b16 %v281
        %v607 = vunpack.c.l.b16 %v282
        %v608 = vunpack.c.l.b16 %v283
        %v609 = vunpack.c.l.b16 %v284
        %v610 = vunpack.c.l.b16 %v285
        %v611 = vunpack.c.l.b16 %v286
        %v612 = vunpack.c.l.b16 %v287
        %v613 = vunpack.c.l.b16 %v288
        %v614 = vunpack.c.l.b16 %v289
        %v615 = vunpack.c.l.b16 %v290
        %v616 = vunpack.c.l.b16 %v291
        %v617 = vunpack.c.l.b16 %v292
        %v618 = vunpack.c.l.b16 %v293
        %v619 = vunpack.c.l.b16 %v294
        %v620 = vunpack.c.l.b16 %v295
        %v621 = vunpack.c.l.b16 %v296
        %v622 = vunpack.c.l.b16 %v297
        %v623 = vunpack.c.l.b16 %v298
        %v624 = vunpack.c.l.b16 %v299
        %v625 = vunpack.c.l.b16 %v300
        %v626 = vunpack.c.l.b16 %v301
        %v627 = vunpack.c.l.b16 %v302
        %v628 = vunpack.c.l.b16 %v303
        %v629 = vunpack.c.l.b16 %v304
        %v630 = vunpack.c.l.b16 %v305
        %v631 = vunpack.c.l.b16 %v306
        %v632 = vpack.c.b16 %v593, %v592
        %v633 = vpack.c.b16 %v595, %v594
        %v634 = vpack.c.b16 %v597, %v596
        %v635 = vpack.c.b16 %v599, %v598
        %v636 = vpack.c.b16 %v601, %v600
        %v637 = vpack.c.b16 %v603, %v602
        %v638 = vpack.c.b16 %v605, %v604
        %v639 = vpack.c.b16 %v607, %v606
        %v640 = vpack.c.b16 %v609, %v608
        %v641 = vpack.c.b16 %v611, %v610
        %v642 = vpack.c.b16 %v613, %v612
        %v643 = vpack.c.b16 %v615, %v614
        %v644 = vpack.c.b16 %v617, %v616
        %v645 = vpack.c.b16 %v619, %v618
        %v646 = vpack.c.b16 %v621, %v620
        %v647 = vpack.c.b16 %v623, %v622
        %v648 = vpack.c.b16 %v625, %v624
        %v649 = vpack.c.b16 %v627, %v626
        %v650 = vpack.c.b16 %v629, %v628
        %v651 = vpack.c.b16 %v631, %v630
        %vm672 = vcmask 523264
        %v674 = vsel %vm672, %v474, 0
        %v677 = vsel %vm672, %v477, 0
        %v680 = vsel %vm672, %v480, 0
        %v683 = vsel %vm672, %v483, 0
        %v686 = vsel %vm672, %v486, 0
        %v689 = vsel %vm672, %v489, 0
        %v692 = vsel %vm672, %v492, 0
        %v695 = vsel %vm672, %v495, 0
        %v698 = vsel %vm672, %v498, 0
        %v701 = vsel %vm672, %v501, 0
        %v704 = vsel %vm672, %v504, 0
        %v707 = vsel %vm672, %v507, 0
        %v710 = vsel %vm672, %v510, 0
        %v713 = vsel %vm672, %v513, 0
        %v716 = vsel %vm672, %v516, 0
        %v719 = vsel %vm672, %v519, 0
        %721 = vmatprep.subr.bf16.mxu0 0
        %722 = vmatpush1.bf16.msra.mxu0 %v632
        %723 = vmatprep.subr.bf16.mxu0 0
        %724 = vmatpush1.bf16.msra.mxu0 %v633
        %725 = vmatprep.subr.bf16.mxu0 0
        %726 = vmatpush1.bf16.msra.mxu0 %v634
        %727 = vmatprep.subr.bf16.mxu0 0
        %728 = vmatpush1.bf16.msra.mxu0 %v635
        %729 = vmatprep.subr.bf16.mxu0 0
        %730 = vmatpush1.bf16.msra.mxu0 %v636
        %731 = vmatprep.subr.bf16.mxu0 0
        %732 = vmatpush1.bf16.msra.mxu0 %v637
        %733 = vmatprep.subr.bf16.mxu0 0
        %734 = vmatpush1.bf16.msra.mxu0 %v638
        %735 = vmatprep.subr.bf16.mxu0 0
        %736 = vmatpush1.bf16.msra.mxu0 %v639
        %737 = vmatprep.subr.bf16.mxu0 0
        %738 = vmatpush1.bf16.msra.mxu0 %v640
        %739 = vmatprep.subr.bf16.mxu0 0
        %740 = vmatpush1.bf16.msra.mxu0 %v641
        %741 = vmatprep.subr.bf16.mxu0 0
        %742 = vmatpush1.bf16.msra.mxu0 %v642
        %743 = vmatprep.subr.bf16.mxu0 0
        %744 = vmatpush1.bf16.msra.mxu0 %v643
        %745 = vmatprep.subr.bf16.mxu0 0
        %746 = vmatpush1.bf16.msra.mxu0 %v644
        %747 = vmatprep.subr.bf16.mxu0 0
        %748 = vmatpush1.bf16.msra.mxu0 %v645
        %749 = vmatprep.subr.bf16.mxu0 0
        %750 = vmatpush1.bf16.msra.mxu0 %v646
        %751 = vmatprep.subr.bf16.mxu0 0
        %752 = vmatpush1.bf16.msra.mxu0 %v647
        %753 = vmatprep.mubr.bf16.mxu0 %v473
        %754 = vmatmul.mubr.bf16.gmra.mrb[0].mxu0 %v472
        %v755 = vpop.f32.mrb[0].mxu0
        %v756 = vadd.f32 %v311, %v755
        %v757 = vpop.f32.mrb[0].mxu0
        %v758 = vpop.f32.mrb[0].mxu0
        %v759 = vadd.f32 %v311, %v758
        %v760 = vpop.f32.mrb[0].mxu0
        %761 = vmatprep.mubr.bf16.mxu0 %v476
        %762 = vmatmul.mubr.bf16.gmra.mrb[0].mxu0 %v475
        %v763 = vpop.f32.mrb[0].mxu0
        %v764 = vadd.f32 %v311, %v763
        %v765 = vpop.f32.mrb[0].mxu0
        %v766 = vpop.f32.mrb[0].mxu0
        %v767 = vadd.f32 %v311, %v766
        %v768 = vpop.f32.mrb[0].mxu0
        %769 = vmatprep.mubr.bf16.mxu0 %v479
        %770 = vmatmul.mubr.bf16.gmra.mrb[0].mxu0 %v478
        %v771 = vpop.f32.mrb[0].mxu0
        %v772 = vadd.f32 %v311, %v771
        %v773 = vpop.f32.mrb[0].mxu0
        %v774 = vpop.f32.mrb[0].mxu0
        %v775 = vadd.f32 %v311, %v774
        %v776 = vpop.f32.mrb[0].mxu0
        %777 = vmatprep.mubr.bf16.mxu0 %v482
        %778 = vmatmul.mubr.bf16.gmra.mrb[0].mxu0 %v481
        %v779 = vpop.f32.mrb[0].mxu0
        %v780 = vadd.f32 %v311, %v779
        %v781 = vpop.f32.mrb[0].mxu0
        %v782 = vpop.f32.mrb[0].mxu0
        %v783 = vadd.f32 %v311, %v782
        %v784 = vpop.f32.mrb[0].mxu0
        %785 = vmatprep.mubr.bf16.mxu0 %v485
        %786 = vmatmul.mubr.bf16.gmra.mrb[0].mxu0 %v484
        %v787 = vpop.f32.mrb[0].mxu0
        %v788 = vadd.f32 %v311, %v787
        %v789 = vpop.f32.mrb[0].mxu0
        %v790 = vpop.f32.mrb[0].mxu0
        %v791 = vadd.f32 %v311, %v790
        %v792 = vpop.f32.mrb[0].mxu0
        %793 = vmatprep.mubr.bf16.mxu0 %v488
        %794 = vmatmul.mubr.bf16.gmra.mrb[0].mxu0 %v487
        %v795 = vpop.f32.mrb[0].mxu0
        %v796 = vadd.f32 %v311, %v795
        %v797 = vpop.f32.mrb[0].mxu0
        %v798 = vpop.f32.mrb[0].mxu0
        %v799 = vadd.f32 %v311, %v798
        %v800 = vpop.f32.mrb[0].mxu0
        %801 = vmatprep.mubr.bf16.mxu0 %v491
        %802 = vmatmul.mubr.bf16.gmra.mrb[0].mxu0 %v490
        %v803 = vpop.f32.mrb[0].mxu0
        %v804 = vadd.f32 %v311, %v803
        %v805 = vpop.f32.mrb[0].mxu0
        %v806 = vpop.f32.mrb[0].mxu0
        %v807 = vadd.f32 %v311, %v806
        %v808 = vpop.f32.mrb[0].mxu0
        %809 = vmatprep.mubr.bf16.mxu0 %v494
        %810 = vmatmul.mubr.bf16.gmra.mrb[0].mxu0 %v493
        %v811 = vpop.f32.mrb[0].mxu0
        %v812 = vadd.f32 %v311, %v811
        %v813 = vpop.f32.mrb[0].mxu0
        %v814 = vpop.f32.mrb[0].mxu0
        %v815 = vadd.f32 %v311, %v814
        %v816 = vpop.f32.mrb[0].mxu0
        %817 = vmatprep.mubr.bf16.mxu0 %v497
        %818 = vmatmul.mubr.bf16.gmra.mrb[0].mxu0 %v496
        %v819 = vpop.f32.mrb[0].mxu0
        %v820 = vadd.f32 %v311, %v819
        %v821 = vpop.f32.mrb[0].mxu0
        %v822 = vpop.f32.mrb[0].mxu0
        %v823 = vadd.f32 %v311, %v822
        %v824 = vpop.f32.mrb[0].mxu0
        %825 = vmatprep.mubr.bf16.mxu0 %v500
        %826 = vmatmul.mubr.bf16.gmra.mrb[0].mxu0 %v499
        %v827 = vpop.f32.mrb[0].mxu0
        %v828 = vadd.f32 %v311, %v827
        %v829 = vpop.f32.mrb[0].mxu0
        %v830 = vpop.f32.mrb[0].mxu0
        %v831 = vadd.f32 %v311, %v830
        %v832 = vpop.f32.mrb[0].mxu0
        %833 = vmatprep.mubr.bf16.mxu0 %v503
        %834 = vmatmul.mubr.bf16.gmra.mrb[0].mxu0 %v502
        %v835 = vpop.f32.mrb[0].mxu0
        %v836 = vadd.f32 %v311, %v835
        %v837 = vpop.f32.mrb[0].mxu0
        %v838 = vpop.f32.mrb[0].mxu0
        %v839 = vadd.f32 %v311, %v838
        %v840 = vpop.f32.mrb[0].mxu0
        %841 = vmatprep.mubr.bf16.mxu0 %v506
        %842 = vmatmul.mubr.bf16.gmra.mrb[0].mxu0 %v505
        %v843 = vpop.f32.mrb[0].mxu0
        %v844 = vadd.f32 %v311, %v843
        %v845 = vpop.f32.mrb[0].mxu0
        %v846 = vpop.f32.mrb[0].mxu0
        %v847 = vadd.f32 %v311, %v846
        %v848 = vpop.f32.mrb[0].mxu0
        %849 = vmatprep.mubr.bf16.mxu0 %v509
        %850 = vmatmul.mubr.bf16.gmra.mrb[0].mxu0 %v508
        %v851 = vpop.f32.mrb[0].mxu0
        %v852 = vadd.f32 %v311, %v851
        %v853 = vpop.f32.mrb[0].mxu0
        %v854 = vpop.f32.mrb[0].mxu0
        %v855 = vadd.f32 %v311, %v854
        %v856 = vpop.f32.mrb[0].mxu0
        %857 = vmatprep.mubr.bf16.mxu0 %v512
        %858 = vmatmul.mubr.bf16.gmra.mrb[0].mxu0 %v511
        %v859 = vpop.f32.mrb[0].mxu0
        %v860 = vadd.f32 %v311, %v859
        %v861 = vpop.f32.mrb[0].mxu0
        %v862 = vpop.f32.mrb[0].mxu0
        %v863 = vadd.f32 %v311, %v862
        %v864 = vpop.f32.mrb[0].mxu0
        %865 = vmatprep.mubr.bf16.mxu0 %v515
        %866 = vmatmul.mubr.bf16.gmra.mrb[0].mxu0 %v514
        %v867 = vpop.f32.mrb[0].mxu0
        %v868 = vadd.f32 %v311, %v867
        %v869 = vpop.f32.mrb[0].mxu0
        %v870 = vpop.f32.mrb[0].mxu0
        %v871 = vadd.f32 %v311, %v870
        %v872 = vpop.f32.mrb[0].mxu0
        %873 = vmatprep.mubr.bf16.mxu0 %v518
        %874 = vmatmul.mubr.bf16.gmra.mrb[0].mxu0 %v517
        %v875 = vpop.f32.mrb[0].mxu0
        %v876 = vadd.f32 %v311, %v875
        %v877 = vpop.f32.mrb[0].mxu0
        %v878 = vpop.f32.mrb[0].mxu0
        %v879 = vadd.f32 %v311, %v878
        %v880 = vpop.f32.mrb[0].mxu0
        %881 = vdwg.mxu0
        %882 = vmatprep.subr.bf16.mxu0 0
        %883 = vmatpush1.bf16.msra.mxu0 %v648
        %884 = vmatprep.subr.bf16.mxu0 0
        %885 = vmatpush1.bf16.msra.mxu0 %v649
        %886 = vmatprep.subr.bf16.mxu0 0
        %887 = vmatpush1.bf16.msra.mxu0 %v650
        %888 = vmatprep.subr.bf16.mxu0 0
        %889 = vmatpush1.bf16.msra.mxu0 %v651
        %890 = vmatprep.subr.bf16.mxu0 0
        %891 = vmatpush1.bf16.msra.mxu0 0
        %892 = vmatprep.subr.bf16.mxu0 0
        %893 = vmatpush1.bf16.msra.mxu0 0
        %894 = vmatprep.subr.bf16.mxu0 0
        %895 = vmatpush1.bf16.msra.mxu0 0
        %896 = vmatprep.subr.bf16.mxu0 0
        %897 = vmatpush1.bf16.msra.mxu0 0
        %898 = vmatprep.subr.bf16.mxu0 0
        %899 = vmatpush1.bf16.msra.mxu0 0
        %900 = vmatprep.subr.bf16.mxu0 0
        %901 = vmatpush1.bf16.msra.mxu0 0
        %902 = vmatprep.subr.bf16.mxu0 0
        %903 = vmatpush1.bf16.msra.mxu0 0
        %904 = vmatprep.subr.bf16.mxu0 0
        %905 = vmatpush1.bf16.msra.mxu0 0
        %906 = vmatprep.subr.bf16.mxu0 0
        %907 = vmatpush1.bf16.msra.mxu0 0
        %908 = vmatprep.subr.bf16.mxu0 0
        %909 = vmatpush1.bf16.msra.mxu0 0
        %910 = vmatprep.subr.bf16.mxu0 0
        %911 = vmatpush1.bf16.msra.mxu0 0
        %912 = vmatprep.subr.bf16.mxu0 0
        %913 = vmatpush1.bf16.msra.mxu0 0
        %914 = vmatprep.mubr.bf16.mxu0 0
        %915 = vmatmul.mubr.bf16.gmra.mrb[0].mxu0 %v674
        %v916 = vpop.f32.mrb[0].mxu0
        %v917 = vadd.f32 %v756, %v916
        %v918 = vpop.f32.mrb[0].mxu0
        %v919 = vpop.f32.mrb[0].mxu0
        %v920 = vadd.f32 %v759, %v919
        %v921 = vpop.f32.mrb[0].mxu0
        %922 = vmatprep.mubr.bf16.mxu0 0
        %923 = vmatmul.mubr.bf16.gmra.mrb[0].mxu0 %v677
        %v924 = vpop.f32.mrb[0].mxu0
        %v925 = vadd.f32 %v764, %v924
        %v926 = vpop.f32.mrb[0].mxu0
        %v927 = vpop.f32.mrb[0].mxu0
        %v928 = vadd.f32 %v767, %v927
        %v929 = vpop.f32.mrb[0].mxu0
        %930 = vmatprep.mubr.bf16.mxu0 0
        %931 = vmatmul.mubr.bf16.gmra.mrb[0].mxu0 %v680
        %v932 = vpop.f32.mrb[0].mxu0
        %v933 = vadd.f32 %v772, %v932
        %v934 = vpop.f32.mrb[0].mxu0
        %v935 = vpop.f32.mrb[0].mxu0
        %v936 = vadd.f32 %v775, %v935
        %v937 = vpop.f32.mrb[0].mxu0
        %938 = vmatprep.mubr.bf16.mxu0 0
        %939 = vmatmul.mubr.bf16.gmra.mrb[0].mxu0 %v683
        %v940 = vpop.f32.mrb[0].mxu0
        %v941 = vadd.f32 %v780, %v940
        %v942 = vpop.f32.mrb[0].mxu0
        %v943 = vpop.f32.mrb[0].mxu0
        %v944 = vadd.f32 %v783, %v943
        %v945 = vpop.f32.mrb[0].mxu0
        %946 = vmatprep.mubr.bf16.mxu0 0
        %947 = vmatmul.mubr.bf16.gmra.mrb[0].mxu0 %v686
        %v948 = vpop.f32.mrb[0].mxu0
        %v949 = vadd.f32 %v788, %v948
        %v950 = vpop.f32.mrb[0].mxu0
        %v951 = vpop.f32.mrb[0].mxu0
        %v952 = vadd.f32 %v791, %v951
        %v953 = vpop.f32.mrb[0].mxu0
        %954 = vmatprep.mubr.bf16.mxu0 0
        %955 = vmatmul.mubr.bf16.gmra.mrb[0].mxu0 %v689
        %v956 = vpop.f32.mrb[0].mxu0
        %v957 = vadd.f32 %v796, %v956
        %v958 = vpop.f32.mrb[0].mxu0
        %v959 = vpop.f32.mrb[0].mxu0
        %v960 = vadd.f32 %v799, %v959
        %v961 = vpop.f32.mrb[0].mxu0
        %962 = vmatprep.mubr.bf16.mxu0 0
        %963 = vmatmul.mubr.bf16.gmra.mrb[0].mxu0 %v692
        %v964 = vpop.f32.mrb[0].mxu0
        %v965 = vadd.f32 %v804, %v964
        %v966 = vpop.f32.mrb[0].mxu0
        %v967 = vpop.f32.mrb[0].mxu0
        %v968 = vadd.f32 %v807, %v967
        %v969 = vpop.f32.mrb[0].mxu0
        %970 = vmatprep.mubr.bf16.mxu0 0
        %971 = vmatmul.mubr.bf16.gmra.mrb[0].mxu0 %v695
        %v972 = vpop.f32.mrb[0].mxu0
        %v973 = vadd.f32 %v812, %v972
        %v974 = vpop.f32.mrb[0].mxu0
        %v975 = vpop.f32.mrb[0].mxu0
        %v976 = vadd.f32 %v815, %v975
        %v977 = vpop.f32.mrb[0].mxu0
        %978 = vmatprep.mubr.bf16.mxu0 0
        %979 = vmatmul.mubr.bf16.gmra.mrb[0].mxu0 %v698
        %v980 = vpop.f32.mrb[0].mxu0
        %v981 = vadd.f32 %v820, %v980
        %v982 = vpop.f32.mrb[0].mxu0
        %v983 = vpop.f32.mrb[0].mxu0
        %v984 = vadd.f32 %v823, %v983
        %v985 = vpop.f32.mrb[0].mxu0
        %986 = vmatprep.mubr.bf16.mxu0 0
        %987 = vmatmul.mubr.bf16.gmra.mrb[0].mxu0 %v701
        %v988 = vpop.f32.mrb[0].mxu0
        %v989 = vadd.f32 %v828, %v988
        %v990 = vpop.f32.mrb[0].mxu0
        %v991 = vpop.f32.mrb[0].mxu0
        %v992 = vadd.f32 %v831, %v991
        %v993 = vpop.f32.mrb[0].mxu0
        %994 = vmatprep.mubr.bf16.mxu0 0
        %995 = vmatmul.mubr.bf16.gmra.mrb[0].mxu0 %v704
        %v996 = vpop.f32.mrb[0].mxu0
        %v997 = vadd.f32 %v836, %v996
        %v998 = vpop.f32.mrb[0].mxu0
        %v999 = vpop.f32.mrb[0].mxu0
        %v1000 = vadd.f32 %v839, %v999
        %v1001 = vpop.f32.mrb[0].mxu0
        %1002 = vmatprep.mubr.bf16.mxu0 0
        %1003 = vmatmul.mubr.bf16.gmra.mrb[0].mxu0 %v707
        %v1004 = vpop.f32.mrb[0].mxu0
        %v1005 = vadd.f32 %v844, %v1004
        %v1006 = vpop.f32.mrb[0].mxu0
        %v1007 = vpop.f32.mrb[0].mxu0
        %v1008 = vadd.f32 %v847, %v1007
        %v1009 = vpop.f32.mrb[0].mxu0
        %1010 = vmatprep.mubr.bf16.mxu0 0
        %1011 = vmatmul.mubr.bf16.gmra.mrb[0].mxu0 %v710
        %v1012 = vpop.f32.mrb[0].mxu0
        %v1013 = vadd.f32 %v852, %v1012
        %v1014 = vpop.f32.mrb[0].mxu0
        %v1015 = vpop.f32.mrb[0].mxu0
        %v1016 = vadd.f32 %v855, %v1015
        %v1017 = vpop.f32.mrb[0].mxu0
        %1018 = vmatprep.mubr.bf16.mxu0 0
        %1019 = vmatmul.mubr.bf16.gmra.mrb[0].mxu0 %v713
        %v1020 = vpop.f32.mrb[0].mxu0
        %v1021 = vadd.f32 %v860, %v1020
        %v1022 = vpop.f32.mrb[0].mxu0
        %v1023 = vpop.f32.mrb[0].mxu0
        %v1024 = vadd.f32 %v863, %v1023
        %v1025 = vpop.f32.mrb[0].mxu0
        %1026 = vmatprep.mubr.bf16.mxu0 0
        %1027 = vmatmul.mubr.bf16.gmra.mrb[0].mxu0 %v716
        %v1028 = vpop.f32.mrb[0].mxu0
        %v1029 = vadd.f32 %v868, %v1028
        %v1030 = vpop.f32.mrb[0].mxu0
        %v1031 = vpop.f32.mrb[0].mxu0
        %v1032 = vadd.f32 %v871, %v1031
        %v1033 = vpop.f32.mrb[0].mxu0
        %1034 = vmatprep.mubr.bf16.mxu0 0
        %1035 = vmatmul.mubr.bf16.gmra.mrb[0].mxu0 %v719
        %v1036 = vpop.f32.mrb[0].mxu0
        %v1037 = vadd.f32 %v876, %v1036
        %v1038 = vpop.f32.mrb[0].mxu0
        %v1039 = vpop.f32.mrb[0].mxu0
        %v1040 = vadd.f32 %v879, %v1039
        %v1041 = vpop.f32.mrb[0].mxu0
        %1042 = vdwg.mxu0
        %v1043 = vmul.f32 %v917, %v917
        %v1044 = vmul.f32 %v920, %v920
        %v1045 = vmul.f32 %v925, %v925
        %v1046 = vmul.f32 %v928, %v928
        %v1047 = vmul.f32 %v933, %v933
        %v1048 = vmul.f32 %v936, %v936
        %v1049 = vmul.f32 %v941, %v941
        %v1050 = vmul.f32 %v944, %v944
        %v1051 = vmul.f32 %v949, %v949
        %v1052 = vmul.f32 %v952, %v952
        %v1053 = vmul.f32 %v957, %v957
        %v1054 = vmul.f32 %v960, %v960
        %v1055 = vmul.f32 %v965, %v965
        %v1056 = vmul.f32 %v968, %v968
        %v1057 = vmul.f32 %v973, %v973
        %v1058 = vmul.f32 %v976, %v976
        %v1059 = vmul.f32 %v981, %v981
        %v1060 = vmul.f32 %v984, %v984
        %v1061 = vmul.f32 %v989, %v989
        %v1062 = vmul.f32 %v992, %v992
        %v1063 = vmul.f32 %v997, %v997
        %v1064 = vmul.f32 %v1000, %v1000
        %v1065 = vmul.f32 %v1005, %v1005
        %v1066 = vmul.f32 %v1008, %v1008
        %v1067 = vmul.f32 %v1013, %v1013
        %v1068 = vmul.f32 %v1016, %v1016
        %v1069 = vmul.f32 %v1021, %v1021
        %v1070 = vmul.f32 %v1024, %v1024
        %v1071 = vmul.f32 %v1029, %v1029
        %v1072 = vmul.f32 %v1032, %v1032
        %v1073 = vmul.f32 %v1037, %v1037
        %v1074 = vmul.f32 %v1040, %v1040
        %v1075 = vsel %vm672, %v1043, 0.0
        %1076 = vadd.xlane.f32.xlu0 %v1075
        %v1077 = vpop.xlane.xlu0 %1076
        %v1078 = vsel %vm672, %v1044, 0.0
        %1079 = vadd.xlane.f32.xlu0 %v1078
        %v1080 = vpop.xlane.xlu0 %1079
        %v1081 = vsel %vm672, %v1045, 0.0
        %1082 = vadd.xlane.f32.xlu0 %v1081
        %v1083 = vpop.xlane.xlu0 %1082
        %v1084 = vsel %vm672, %v1046, 0.0
        %1085 = vadd.xlane.f32.xlu0 %v1084
        %v1086 = vpop.xlane.xlu0 %1085
        %v1087 = vsel %vm672, %v1047, 0.0
        %1088 = vadd.xlane.f32.xlu0 %v1087
        %v1089 = vpop.xlane.xlu0 %1088
        %v1090 = vsel %vm672, %v1048, 0.0
        %1091 = vadd.xlane.f32.xlu0 %v1090
        %v1092 = vpop.xlane.xlu0 %1091
        %v1093 = vsel %vm672, %v1049, 0.0
        %1094 = vadd.xlane.f32.xlu0 %v1093
        %v1095 = vpop.xlane.xlu0 %1094
        %v1096 = vsel %vm672, %v1050, 0.0
        %1097 = vadd.xlane.f32.xlu0 %v1096
        %v1098 = vpop.xlane.xlu0 %1097
        %v1099 = vsel %vm672, %v1051, 0.0
        %1100 = vadd.xlane.f32.xlu0 %v1099
        %v1101 = vpop.xlane.xlu0 %1100
        %v1102 = vsel %vm672, %v1052, 0.0
        %1103 = vadd.xlane.f32.xlu0 %v1102
        %v1104 = vpop.xlane.xlu0 %1103
        %v1105 = vsel %vm672, %v1053, 0.0
        %1106 = vadd.xlane.f32.xlu0 %v1105
        %v1107 = vpop.xlane.xlu0 %1106
        %v1108 = vsel %vm672, %v1054, 0.0
        %1109 = vadd.xlane.f32.xlu0 %v1108
        %v1110 = vpop.xlane.xlu0 %1109
        %v1111 = vsel %vm672, %v1055, 0.0
        %1112 = vadd.xlane.f32.xlu0 %v1111
        %v1113 = vpop.xlane.xlu0 %1112
        %v1114 = vsel %vm672, %v1056, 0.0
        %1115 = vadd.xlane.f32.xlu0 %v1114
        %v1116 = vpop.xlane.xlu0 %1115
        %v1117 = vsel %vm672, %v1057, 0.0
        %1118 = vadd.xlane.f32.xlu0 %v1117
        %v1119 = vpop.xlane.xlu0 %1118
        %v1120 = vsel %vm672, %v1058, 0.0
        %1121 = vadd.xlane.f32.xlu0 %v1120
        %v1122 = vpop.xlane.xlu0 %1121
        %v1123 = vsel %vm672, %v1059, 0.0
        %1124 = vadd.xlane.f32.xlu0 %v1123
        %v1125 = vpop.xlane.xlu0 %1124
        %v1126 = vsel %vm672, %v1060, 0.0
        %1127 = vadd.xlane.f32.xlu0 %v1126
        %v1128 = vpop.xlane.xlu0 %1127
        %v1129 = vsel %vm672, %v1061, 0.0
        %1130 = vadd.xlane.f32.xlu0 %v1129
        %v1131 = vpop.xlane.xlu0 %1130
        %v1132 = vsel %vm672, %v1062, 0.0
        %1133 = vadd.xlane.f32.xlu0 %v1132
        %v1134 = vpop.xlane.xlu0 %1133
        %v1135 = vsel %vm672, %v1063, 0.0
        %1136 = vadd.xlane.f32.xlu0 %v1135
        %v1137 = vpop.xlane.xlu0 %1136
        %v1138 = vsel %vm672, %v1064, 0.0
        %1139 = vadd.xlane.f32.xlu0 %v1138
        %v1140 = vpop.xlane.xlu0 %1139
        %v1141 = vsel %vm672, %v1065, 0.0
        %1142 = vadd.xlane.f32.xlu0 %v1141
        %v1143 = vpop.xlane.xlu0 %1142
        %v1144 = vsel %vm672, %v1066, 0.0
        %1145 = vadd.xlane.f32.xlu0 %v1144
        %v1146 = vpop.xlane.xlu0 %1145
        %v1147 = vsel %vm672, %v1067, 0.0
        %1148 = vadd.xlane.f32.xlu0 %v1147
        %v1149 = vpop.xlane.xlu0 %1148
        %v1150 = vsel %vm672, %v1068, 0.0
        %1151 = vadd.xlane.f32.xlu0 %v1150
        %v1152 = vpop.xlane.xlu0 %1151
        %v1153 = vsel %vm672, %v1069, 0.0
        %1154 = vadd.xlane.f32.xlu0 %v1153
        %v1155 = vpop.xlane.xlu0 %1154
        %v1156 = vsel %vm672, %v1070, 0.0
        %1157 = vadd.xlane.f32.xlu0 %v1156
        %v1158 = vpop.xlane.xlu0 %1157
        %v1159 = vsel %vm672, %v1071, 0.0
        %1160 = vadd.xlane.f32.xlu0 %v1159
        %v1161 = vpop.xlane.xlu0 %1160
        %v1162 = vsel %vm672, %v1072, 0.0
        %1163 = vadd.xlane.f32.xlu0 %v1162
        %v1164 = vpop.xlane.xlu0 %1163
        %v1165 = vsel %vm672, %v1073, 0.0
        %1166 = vadd.xlane.f32.xlu0 %v1165
        %v1167 = vpop.xlane.xlu0 %1166
        %v1168 = vsel %vm672, %v1074, 0.0
        %1169 = vadd.xlane.f32.xlu0 %v1168
        %v1170 = vpop.xlane.xlu0 %1169
        %v1171 = vrcp.pop 64.0
        %v1172 = vmul.f32 %v1077, %v1171
        %v1173 = vmul.f32 %v1080, %v1171
        %v1174 = vmul.f32 %v1083, %v1171
        %v1175 = vmul.f32 %v1086, %v1171
        %v1176 = vmul.f32 %v1089, %v1171
        %v1177 = vmul.f32 %v1092, %v1171
        %v1178 = vmul.f32 %v1095, %v1171
        %v1179 = vmul.f32 %v1098, %v1171
        %v1180 = vmul.f32 %v1101, %v1171
        %v1181 = vmul.f32 %v1104, %v1171
        %v1182 = vmul.f32 %v1107, %v1171
        %v1183 = vmul.f32 %v1110, %v1171
        %v1184 = vmul.f32 %v1113, %v1171
        %v1185 = vmul.f32 %v1116, %v1171
        %v1186 = vmul.f32 %v1119, %v1171
        %v1187 = vmul.f32 %v1122, %v1171
        %v1188 = vmul.f32 %v1125, %v1171
        %v1189 = vmul.f32 %v1128, %v1171
        %v1190 = vmul.f32 %v1131, %v1171
        %v1191 = vmul.f32 %v1134, %v1171
        %v1192 = vmul.f32 %v1137, %v1171
        %v1193 = vmul.f32 %v1140, %v1171
        %v1194 = vmul.f32 %v1143, %v1171
        %v1195 = vmul.f32 %v1146, %v1171
        %v1196 = vmul.f32 %v1149, %v1171
        %v1197 = vmul.f32 %v1152, %v1171
        %v1198 = vmul.f32 %v1155, %v1171
        %v1199 = vmul.f32 %v1158, %v1171
        %v1200 = vmul.f32 %v1161, %v1171
        %v1201 = vmul.f32 %v1164, %v1171
        %v1202 = vmul.f32 %v1167, %v1171
        %v1203 = vmul.f32 %v1170, %v1171
        %v1204 = vadd.f32 %v1172, 1e-05
        %v1205 = vadd.f32 %v1173, 1e-05
        %v1206 = vadd.f32 %v1174, 1e-05
        %v1207 = vadd.f32 %v1175, 1e-05
        %v1208 = vadd.f32 %v1176, 1e-05
        %v1209 = vadd.f32 %v1177, 1e-05
        %v1210 = vadd.f32 %v1178, 1e-05
        %v1211 = vadd.f32 %v1179, 1e-05
        %v1212 = vadd.f32 %v1180, 1e-05
        %v1213 = vadd.f32 %v1181, 1e-05
        %v1214 = vadd.f32 %v1182, 1e-05
        %v1215 = vadd.f32 %v1183, 1e-05
        %v1216 = vadd.f32 %v1184, 1e-05
        %v1217 = vadd.f32 %v1185, 1e-05
        %v1218 = vadd.f32 %v1186, 1e-05
        %v1219 = vadd.f32 %v1187, 1e-05
        %v1220 = vadd.f32 %v1188, 1e-05
        %v1221 = vadd.f32 %v1189, 1e-05
        %v1222 = vadd.f32 %v1190, 1e-05
        %v1223 = vadd.f32 %v1191, 1e-05
        %v1224 = vadd.f32 %v1192, 1e-05
        %v1225 = vadd.f32 %v1193, 1e-05
        %v1226 = vadd.f32 %v1194, 1e-05
        %v1227 = vadd.f32 %v1195, 1e-05
        %v1228 = vadd.f32 %v1196, 1e-05
        %v1229 = vadd.f32 %v1197, 1e-05
        %v1230 = vadd.f32 %v1198, 1e-05
        %v1231 = vadd.f32 %v1199, 1e-05
        %v1232 = vadd.f32 %v1200, 1e-05
        %v1233 = vadd.f32 %v1201, 1e-05
        %v1234 = vadd.f32 %v1202, 1e-05
        %v1235 = vadd.f32 %v1203, 1e-05
        %v1236 = vrsqrt.pop %v1204
        %v1237 = vrsqrt.pop %v1205
        %v1238 = vrsqrt.pop %v1206
        %v1239 = vrsqrt.pop %v1207
        %v1240 = vrsqrt.pop %v1208
        %v1241 = vrsqrt.pop %v1209
        %v1242 = vrsqrt.pop %v1210
        %v1243 = vrsqrt.pop %v1211
        %v1244 = vrsqrt.pop %v1212
        %v1245 = vrsqrt.pop %v1213
        %v1246 = vrsqrt.pop %v1214
        %v1247 = vrsqrt.pop %v1215
        %v1248 = vrsqrt.pop %v1216
        %v1249 = vrsqrt.pop %v1217
        %v1250 = vrsqrt.pop %v1218
        %v1251 = vrsqrt.pop %v1219
        %v1252 = vrsqrt.pop %v1220
        %v1253 = vrsqrt.pop %v1221
        %v1254 = vrsqrt.pop %v1222
        %v1255 = vrsqrt.pop %v1223
        %v1256 = vrsqrt.pop %v1224
        %v1257 = vrsqrt.pop %v1225
        %v1258 = vrsqrt.pop %v1226
        %v1259 = vrsqrt.pop %v1227
        %v1260 = vrsqrt.pop %v1228
        %v1261 = vrsqrt.pop %v1229
        %v1262 = vrsqrt.pop %v1230
        %v1263 = vrsqrt.pop %v1231
        %v1264 = vrsqrt.pop %v1232
        %v1265 = vrsqrt.pop %v1233
        %v1266 = vrsqrt.pop %v1234
        %v1267 = vrsqrt.pop %v1235
        %v1268 = vmul.f32 %v917, %v1236
        %v1269 = vmul.f32 %v920, %v1237
        %v1270 = vmul.f32 %v925, %v1238
        %v1271 = vmul.f32 %v928, %v1239
        %v1272 = vmul.f32 %v933, %v1240
        %v1273 = vmul.f32 %v936, %v1241
        %v1274 = vmul.f32 %v941, %v1242
        %v1275 = vmul.f32 %v944, %v1243
        %v1276 = vmul.f32 %v949, %v1244
        %v1277 = vmul.f32 %v952, %v1245
        %v1278 = vmul.f32 %v957, %v1246
        %v1279 = vmul.f32 %v960, %v1247
        %v1280 = vmul.f32 %v965, %v1248
        %v1281 = vmul.f32 %v968, %v1249
        %v1282 = vmul.f32 %v973, %v1250
        %v1283 = vmul.f32 %v976, %v1251
        %v1284 = vmul.f32 %v981, %v1252
        %v1285 = vmul.f32 %v984, %v1253
        %v1286 = vmul.f32 %v989, %v1254
        %v1287 = vmul.f32 %v992, %v1255
        %v1288 = vmul.f32 %v997, %v1256
        %v1289 = vmul.f32 %v1000, %v1257
        %v1290 = vmul.f32 %v1005, %v1258
        %v1291 = vmul.f32 %v1008, %v1259
        %v1292 = vmul.f32 %v1013, %v1260
        %v1293 = vmul.f32 %v1016, %v1261
        %v1294 = vmul.f32 %v1021, %v1262
        %v1295 = vmul.f32 %v1024, %v1263
        %v1296 = vmul.f32 %v1029, %v1264
        %v1297 = vmul.f32 %v1032, %v1265
        %v1298 = vmul.f32 %v1037, %v1266
        %v1299 = vmul.f32 %v1040, %v1267
        %v1300 = vld [vmem:[%s3 + $0x2] sm:$0x1]
        %v1301 = vlaneseq
        %v1302 = vshrl.u32 %v1301, 7
        %v1303 = vsub.s32 0, %v1302
        %v1304 = vrot.slane %v1300, %v1303
        %v1305 = vmul.f32 %v1268, %v1304
        %v1306 = vmul.f32 %v1269, %v1304
        %v1307 = vmul.f32 %v1270, %v1304
        %v1308 = vmul.f32 %v1271, %v1304
        %v1309 = vmul.f32 %v1272, %v1304
        %v1310 = vmul.f32 %v1273, %v1304
        %v1311 = vmul.f32 %v1274, %v1304
        %v1312 = vmul.f32 %v1275, %v1304
        %v1313 = vmul.f32 %v1276, %v1304
        %v1314 = vmul.f32 %v1277, %v1304
        %v1315 = vmul.f32 %v1278, %v1304
        %v1316 = vmul.f32 %v1279, %v1304
        %v1317 = vmul.f32 %v1280, %v1304
        %v1318 = vmul.f32 %v1281, %v1304
        %v1319 = vmul.f32 %v1282, %v1304
        %v1320 = vmul.f32 %v1283, %v1304
        %v1321 = vmul.f32 %v1284, %v1304
        %v1322 = vmul.f32 %v1285, %v1304
        %v1323 = vmul.f32 %v1286, %v1304
        %v1324 = vmul.f32 %v1287, %v1304
        %v1325 = vmul.f32 %v1288, %v1304
        %v1326 = vmul.f32 %v1289, %v1304
        %v1327 = vmul.f32 %v1290, %v1304
        %v1328 = vmul.f32 %v1291, %v1304
        %v1329 = vmul.f32 %v1292, %v1304
        %v1330 = vmul.f32 %v1293, %v1304
        %v1331 = vmul.f32 %v1294, %v1304
        %v1332 = vmul.f32 %v1295, %v1304
        %v1333 = vmul.f32 %v1296, %v1304
        %v1334 = vmul.f32 %v1297, %v1304
        %v1335 = vmul.f32 %v1298, %v1304
        %v1336 = vmul.f32 %v1299, %v1304
        %v1337 = vld [vmem:[%s3 + $0x3] sm:$0x1]
        %v1338 = vlaneseq
        %v1339 = vshrl.u32 %v1338, 7
        %v1340 = vsub.s32 0, %v1339
        %v1341 = vrot.slane %v1337, %v1340
        %v1342 = vadd.f32 %v1305, %v1341
        %v1343 = vadd.f32 %v1306, %v1341
        %v1344 = vadd.f32 %v1307, %v1341
        %v1345 = vadd.f32 %v1308, %v1341
        %v1346 = vadd.f32 %v1309, %v1341
        %v1347 = vadd.f32 %v1310, %v1341
        %v1348 = vadd.f32 %v1311, %v1341
        %v1349 = vadd.f32 %v1312, %v1341
        %v1350 = vadd.f32 %v1313, %v1341
        %v1351 = vadd.f32 %v1314, %v1341
        %v1352 = vadd.f32 %v1315, %v1341
        %v1353 = vadd.f32 %v1316, %v1341
        %v1354 = vadd.f32 %v1317, %v1341
        %v1355 = vadd.f32 %v1318, %v1341
        %v1356 = vadd.f32 %v1319, %v1341
        %v1357 = vadd.f32 %v1320, %v1341
        %v1358 = vadd.f32 %v1321, %v1341
        %v1359 = vadd.f32 %v1322, %v1341
        %v1360 = vadd.f32 %v1323, %v1341
        %v1361 = vadd.f32 %v1324, %v1341
        %v1362 = vadd.f32 %v1325, %v1341
        %v1363 = vadd.f32 %v1326, %v1341
        %v1364 = vadd.f32 %v1327, %v1341
        %v1365 = vadd.f32 %v1328, %v1341
        %v1366 = vadd.f32 %v1329, %v1341
        %v1367 = vadd.f32 %v1330, %v1341
        %v1368 = vadd.f32 %v1331, %v1341
        %v1369 = vadd.f32 %v1332, %v1341
        %v1370 = vadd.f32 %v1333, %v1341
        %v1371 = vadd.f32 %v1334, %v1341
        %v1372 = vadd.f32 %v1335, %v1341
        %v1373 = vadd.f32 %v1336, %v1341
        %v1374 = vmax.f32 %v1342, 0.0
        %v1375 = vmax.f32 %v1343, 0.0
        %v1376 = vmax.f32 %v1344, 0.0
        %v1377 = vmax.f32 %v1345, 0.0
        %v1378 = vmax.f32 %v1346, 0.0
        %v1379 = vmax.f32 %v1347, 0.0
        %v1380 = vmax.f32 %v1348, 0.0
        %v1381 = vmax.f32 %v1349, 0.0
        %v1382 = vmax.f32 %v1350, 0.0
        %v1383 = vmax.f32 %v1351, 0.0
        %v1384 = vmax.f32 %v1352, 0.0
        %v1385 = vmax.f32 %v1353, 0.0
        %v1386 = vmax.f32 %v1354, 0.0
        %v1387 = vmax.f32 %v1355, 0.0
        %v1388 = vmax.f32 %v1356, 0.0
        %v1389 = vmax.f32 %v1357, 0.0
        %v1390 = vmax.f32 %v1358, 0.0
        %v1391 = vmax.f32 %v1359, 0.0
        %v1392 = vmax.f32 %v1360, 0.0
        %v1393 = vmax.f32 %v1361, 0.0
        %v1394 = vmax.f32 %v1362, 0.0
        %v1395 = vmax.f32 %v1363, 0.0
        %v1396 = vmax.f32 %v1364, 0.0
        %v1397 = vmax.f32 %v1365, 0.0
        %v1398 = vmax.f32 %v1366, 0.0
        %v1399 = vmax.f32 %v1367, 0.0
        %v1400 = vmax.f32 %v1368, 0.0
        %v1401 = vmax.f32 %v1369, 0.0
        %v1402 = vmax.f32 %v1370, 0.0
        %v1403 = vmax.f32 %v1371, 0.0
        %v1404 = vmax.f32 %v1372, 0.0
        %v1405 = vmax.f32 %v1373, 0.0
        %v1406 = vpack.c.bf16 %v1375, %v1374
        %v1407 = vpack.c.bf16 %v1377, %v1376
        %v1408 = vpack.c.bf16 %v1379, %v1378
        %v1409 = vpack.c.bf16 %v1381, %v1380
        %v1410 = vpack.c.bf16 %v1383, %v1382
        %v1411 = vpack.c.bf16 %v1385, %v1384
        %v1412 = vpack.c.bf16 %v1387, %v1386
        %v1413 = vpack.c.bf16 %v1389, %v1388
        %v1414 = vpack.c.bf16 %v1391, %v1390
        %v1415 = vpack.c.bf16 %v1393, %v1392
        %v1416 = vpack.c.bf16 %v1395, %v1394
        %v1417 = vpack.c.bf16 %v1397, %v1396
        %v1418 = vpack.c.bf16 %v1399, %v1398
        %v1419 = vpack.c.bf16 %v1401, %v1400
        %v1420 = vpack.c.bf16 %v1403, %v1402
        %v1421 = vpack.c.bf16 %v1405, %v1404
        %v1422 = vld [vmem:[%s2] sm:$0xf]
        %v1423 = vld [vmem:[%s2 + $0x4] sm:$0xf]
        %v1424 = vld [vmem:[%s2 + $0x8] sm:$0xf]
        %v1425 = vld [vmem:[%s2 + $0xc] sm:$0xf]
        %v1426 = vld [vmem:[%s2 + $0x10] sm:$0xf]
        %v1427 = vld [vmem:[%s2 + $0x14] sm:$0xf]
        %v1428 = vld [vmem:[%s2 + $0x18] sm:$0xf]
        %v1429 = vld [vmem:[%s2 + $0x1c] sm:$0xf]
        %v1430 = vld [vmem:[%s3 + $0x1] sm:$0x1]
        %v1431 = vlaneseq
        %v1432 = vshrl.u32 %v1431, 7
        %v1433 = vsub.s32 0, %v1432
        %v1434 = vrot.slane %v1430, %v1433
        %v1443 = vunpack.c.l.b16 %v1422
        %v1444 = vunpack.c.l.b16 %v1423
        %v1445 = vunpack.c.l.b16 %v1424
        %v1446 = vunpack.c.l.b16 %v1425
        %v1447 = vunpack.c.l.b16 %v1426
        %v1448 = vunpack.c.l.b16 %v1427
        %v1449 = vunpack.c.l.b16 %v1428
        %v1450 = vunpack.c.l.b16 %v1429
        %v1451 = vpack.c.b16 %v1444, %v1443
        %v1452 = vpack.c.b16 %v1446, %v1445
        %v1453 = vpack.c.b16 %v1448, %v1447
        %v1454 = vpack.c.b16 %v1450, %v1449
        %v1460 = vsel %vm672, %v1406, 0
        %v1463 = vsel %vm672, %v1407, 0
        %v1466 = vsel %vm672, %v1408, 0
        %v1469 = vsel %vm672, %v1409, 0
        %v1472 = vsel %vm672, %v1410, 0
        %v1475 = vsel %vm672, %v1411, 0
        %v1478 = vsel %vm672, %v1412, 0
        %v1481 = vsel %vm672, %v1413, 0
        %v1484 = vsel %vm672, %v1414, 0
        %v1487 = vsel %vm672, %v1415, 0
        %v1490 = vsel %vm672, %v1416, 0
        %v1493 = vsel %vm672, %v1417, 0
        %v1496 = vsel %vm672, %v1418, 0
        %v1499 = vsel %vm672, %v1419, 0
        %v1502 = vsel %vm672, %v1420, 0
        %v1505 = vsel %vm672, %v1421, 0
        %1507 = vmatprep.subr.bf16.mxu0 0
        %1508 = vmatpush1.bf16.msra.mxu0 %v1451
        %1509 = vmatprep.subr.bf16.mxu0 0
        %1510 = vmatpush1.bf16.msra.mxu0 %v1452
        %1511 = vmatprep.subr.bf16.mxu0 0
        %1512 = vmatpush1.bf16.msra.mxu0 %v1453
        %1513 = vmatprep.subr.bf16.mxu0 0
        %1514 = vmatpush1.bf16.msra.mxu0 %v1454
        %1515 = vmatprep.subr.bf16.mxu0 0
        %1516 = vmatpush1.bf16.msra.mxu0 0
        %1517 = vmatprep.subr.bf16.mxu0 0
        %1518 = vmatpush1.bf16.msra.mxu0 0
        %1519 = vmatprep.subr.bf16.mxu0 0
        %1520 = vmatpush1.bf16.msra.mxu0 0
        %1521 = vmatprep.subr.bf16.mxu0 0
        %1522 = vmatpush1.bf16.msra.mxu0 0
        %1523 = vmatprep.subr.bf16.mxu0 0
        %1524 = vmatpush1.bf16.msra.mxu0 0
        %1525 = vmatprep.subr.bf16.mxu0 0
        %1526 = vmatpush1.bf16.msra.mxu0 0
        %1527 = vmatprep.subr.bf16.mxu0 0
        %1528 = vmatpush1.bf16.msra.mxu0 0
        %1529 = vmatprep.subr.bf16.mxu0 0
        %1530 = vmatpush1.bf16.msra.mxu0 0
        %1531 = vmatprep.subr.bf16.mxu0 0
        %1532 = vmatpush1.bf16.msra.mxu0 0
        %1533 = vmatprep.subr.bf16.mxu0 0
        %1534 = vmatpush1.bf16.msra.mxu0 0
        %1535 = vmatprep.subr.bf16.mxu0 0
        %1536 = vmatpush1.bf16.msra.mxu0 0
        %1537 = vmatprep.subr.bf16.mxu0 0
        %1538 = vmatpush1.bf16.msra.mxu0 0
        %1539 = vmatprep.mubr.bf16.mxu0 0
        %1540 = vmatmul.mubr.bf16.gmra.mrb[0].mxu0 %v1460
        %v1541 = vpop.f32.mrb[0].mxu0
        %v1542 = vadd.f32 %v1434, %v1541
        %v1543 = vpop.f32.mrb[0].mxu0
        %v1544 = vpop.f32.mrb[0].mxu0
        %v1545 = vadd.f32 %v1434, %v1544
        %v1546 = vpop.f32.mrb[0].mxu0
        %1547 = vmatprep.mubr.bf16.mxu0 0
        %1548 = vmatmul.mubr.bf16.gmra.mrb[0].mxu0 %v1463
        %v1549 = vpop.f32.mrb[0].mxu0
        %v1550 = vadd.f32 %v1434, %v1549
        %v1551 = vpop.f32.mrb[0].mxu0
        %v1552 = vpop.f32.mrb[0].mxu0
        %v1553 = vadd.f32 %v1434, %v1552
        %v1554 = vpop.f32.mrb[0].mxu0
        %1555 = vmatprep.mubr.bf16.mxu0 0
        %1556 = vmatmul.mubr.bf16.gmra.mrb[0].mxu0 %v1466
        %v1557 = vpop.f32.mrb[0].mxu0
        %v1558 = vadd.f32 %v1434, %v1557
        %v1559 = vpop.f32.mrb[0].mxu0
        %v1560 = vpop.f32.mrb[0].mxu0
        %v1561 = vadd.f32 %v1434, %v1560
        %v1562 = vpop.f32.mrb[0].mxu0
        %1563 = vmatprep.mubr.bf16.mxu0 0
        %1564 = vmatmul.mubr.bf16.gmra.mrb[0].mxu0 %v1469
        %v1565 = vpop.f32.mrb[0].mxu0
        %v1566 = vadd.f32 %v1434, %v1565
        %v1567 = vpop.f32.mrb[0].mxu0
        %v1568 = vpop.f32.mrb[0].mxu0
        %v1569 = vadd.f32 %v1434, %v1568
        %v1570 = vpop.f32.mrb[0].mxu0
        %1571 = vmatprep.mubr.bf16.mxu0 0
        %1572 = vmatmul.mubr.bf16.gmra.mrb[0].mxu0 %v1472
        %v1573 = vpop.f32.mrb[0].mxu0
        %v1574 = vadd.f32 %v1434, %v1573
        %v1575 = vpop.f32.mrb[0].mxu0
        %v1576 = vpop.f32.mrb[0].mxu0
        %v1577 = vadd.f32 %v1434, %v1576
        %v1578 = vpop.f32.mrb[0].mxu0
        %1579 = vmatprep.mubr.bf16.mxu0 0
        %1580 = vmatmul.mubr.bf16.gmra.mrb[0].mxu0 %v1475
        %v1581 = vpop.f32.mrb[0].mxu0
        %v1582 = vadd.f32 %v1434, %v1581
        %v1583 = vpop.f32.mrb[0].mxu0
        %v1584 = vpop.f32.mrb[0].mxu0
        %v1585 = vadd.f32 %v1434, %v1584
        %v1586 = vpop.f32.mrb[0].mxu0
        %1587 = vmatprep.mubr.bf16.mxu0 0
        %1588 = vmatmul.mubr.bf16.gmra.mrb[0].mxu0 %v1478
        %v1589 = vpop.f32.mrb[0].mxu0
        %v1590 = vadd.f32 %v1434, %v1589
        %v1591 = vpop.f32.mrb[0].mxu0
        %v1592 = vpop.f32.mrb[0].mxu0
        %v1593 = vadd.f32 %v1434, %v1592
        %v1594 = vpop.f32.mrb[0].mxu0
        %1595 = vmatprep.mubr.bf16.mxu0 0
        %1596 = vmatmul.mubr.bf16.gmra.mrb[0].mxu0 %v1481
        %v1597 = vpop.f32.mrb[0].mxu0
        %v1598 = vadd.f32 %v1434, %v1597
        %v1599 = vpop.f32.mrb[0].mxu0
        %v1600 = vpop.f32.mrb[0].mxu0
        %v1601 = vadd.f32 %v1434, %v1600
        %v1602 = vpop.f32.mrb[0].mxu0
        %1603 = vmatprep.mubr.bf16.mxu0 0
        %1604 = vmatmul.mubr.bf16.gmra.mrb[0].mxu0 %v1484
        %v1605 = vpop.f32.mrb[0].mxu0
        %v1606 = vadd.f32 %v1434, %v1605
        %v1607 = vpop.f32.mrb[0].mxu0
        %v1608 = vpop.f32.mrb[0].mxu0
        %v1609 = vadd.f32 %v1434, %v1608
        %v1610 = vpop.f32.mrb[0].mxu0
        %1611 = vmatprep.mubr.bf16.mxu0 0
        %1612 = vmatmul.mubr.bf16.gmra.mrb[0].mxu0 %v1487
        %v1613 = vpop.f32.mrb[0].mxu0
        %v1614 = vadd.f32 %v1434, %v1613
        %v1615 = vpop.f32.mrb[0].mxu0
        %v1616 = vpop.f32.mrb[0].mxu0
        %v1617 = vadd.f32 %v1434, %v1616
        %v1618 = vpop.f32.mrb[0].mxu0
        %1619 = vmatprep.mubr.bf16.mxu0 0
        %1620 = vmatmul.mubr.bf16.gmra.mrb[0].mxu0 %v1490
        %v1621 = vpop.f32.mrb[0].mxu0
        %v1622 = vadd.f32 %v1434, %v1621
        %v1623 = vpop.f32.mrb[0].mxu0
        %v1624 = vpop.f32.mrb[0].mxu0
        %v1625 = vadd.f32 %v1434, %v1624
        %v1626 = vpop.f32.mrb[0].mxu0
        %1627 = vmatprep.mubr.bf16.mxu0 0
        %1628 = vmatmul.mubr.bf16.gmra.mrb[0].mxu0 %v1493
        %v1629 = vpop.f32.mrb[0].mxu0
        %v1630 = vadd.f32 %v1434, %v1629
        %v1631 = vpop.f32.mrb[0].mxu0
        %v1632 = vpop.f32.mrb[0].mxu0
        %v1633 = vadd.f32 %v1434, %v1632
        %v1634 = vpop.f32.mrb[0].mxu0
        %1635 = vmatprep.mubr.bf16.mxu0 0
        %1636 = vmatmul.mubr.bf16.gmra.mrb[0].mxu0 %v1496
        %v1637 = vpop.f32.mrb[0].mxu0
        %v1638 = vadd.f32 %v1434, %v1637
        %v1639 = vpop.f32.mrb[0].mxu0
        %v1640 = vpop.f32.mrb[0].mxu0
        %v1641 = vadd.f32 %v1434, %v1640
        %v1642 = vpop.f32.mrb[0].mxu0
        %1643 = vmatprep.mubr.bf16.mxu0 0
        %1644 = vmatmul.mubr.bf16.gmra.mrb[0].mxu0 %v1499
        %v1645 = vpop.f32.mrb[0].mxu0
        %v1646 = vadd.f32 %v1434, %v1645
        %v1647 = vpop.f32.mrb[0].mxu0
        %v1648 = vpop.f32.mrb[0].mxu0
        %v1649 = vadd.f32 %v1434, %v1648
        %v1650 = vpop.f32.mrb[0].mxu0
        %1651 = vmatprep.mubr.bf16.mxu0 0
        %1652 = vmatmul.mubr.bf16.gmra.mrb[0].mxu0 %v1502
        %v1653 = vpop.f32.mrb[0].mxu0
        %v1654 = vadd.f32 %v1434, %v1653
        %v1655 = vpop.f32.mrb[0].mxu0
        %v1656 = vpop.f32.mrb[0].mxu0
        %v1657 = vadd.f32 %v1434, %v1656
        %v1658 = vpop.f32.mrb[0].mxu0
        %1659 = vmatprep.mubr.bf16.mxu0 0
        %1660 = vmatmul.mubr.bf16.gmra.mrb[0].mxu0 %v1505
        %v1661 = vpop.f32.mrb[0].mxu0
        %v1662 = vadd.f32 %v1434, %v1661
        %v1663 = vpop.f32.mrb[0].mxu0
        %v1664 = vpop.f32.mrb[0].mxu0
        %v1665 = vadd.f32 %v1434, %v1664
        %v1666 = vpop.f32.mrb[0].mxu0
        %1667 = vdwg.mxu0
        %v1668 = vmul.f32 %v1542, %v1542
        %v1669 = vmul.f32 %v1545, %v1545
        %v1670 = vmul.f32 %v1550, %v1550
        %v1671 = vmul.f32 %v1553, %v1553
        %v1672 = vmul.f32 %v1558, %v1558
        %v1673 = vmul.f32 %v1561, %v1561
        %v1674 = vmul.f32 %v1566, %v1566
        %v1675 = vmul.f32 %v1569, %v1569
        %v1676 = vmul.f32 %v1574, %v1574
        %v1677 = vmul.f32 %v1577, %v1577
        %v1678 = vmul.f32 %v1582, %v1582
        %v1679 = vmul.f32 %v1585, %v1585
        %v1680 = vmul.f32 %v1590, %v1590
        %v1681 = vmul.f32 %v1593, %v1593
        %v1682 = vmul.f32 %v1598, %v1598
        %v1683 = vmul.f32 %v1601, %v1601
        %v1684 = vmul.f32 %v1606, %v1606
        %v1685 = vmul.f32 %v1609, %v1609
        %v1686 = vmul.f32 %v1614, %v1614
        %v1687 = vmul.f32 %v1617, %v1617
        %v1688 = vmul.f32 %v1622, %v1622
        %v1689 = vmul.f32 %v1625, %v1625
        %v1690 = vmul.f32 %v1630, %v1630
        %v1691 = vmul.f32 %v1633, %v1633
        %v1692 = vmul.f32 %v1638, %v1638
        %v1693 = vmul.f32 %v1641, %v1641
        %v1694 = vmul.f32 %v1646, %v1646
        %v1695 = vmul.f32 %v1649, %v1649
        %v1696 = vmul.f32 %v1654, %v1654
        %v1697 = vmul.f32 %v1657, %v1657
        %v1698 = vmul.f32 %v1662, %v1662
        %v1699 = vmul.f32 %v1665, %v1665
        %v1700 = vsel %vm672, %v1668, 0.0
        %1701 = vadd.xlane.f32.xlu0 %v1700
        %v1702 = vpop.xlane.xlu0 %1701
        %v1703 = vsel %vm672, %v1669, 0.0
        %1704 = vadd.xlane.f32.xlu0 %v1703
        %v1705 = vpop.xlane.xlu0 %1704
        %v1706 = vsel %vm672, %v1670, 0.0
        %1707 = vadd.xlane.f32.xlu0 %v1706
        %v1708 = vpop.xlane.xlu0 %1707
        %v1709 = vsel %vm672, %v1671, 0.0
        %1710 = vadd.xlane.f32.xlu0 %v1709
        %v1711 = vpop.xlane.xlu0 %1710
        %v1712 = vsel %vm672, %v1672, 0.0
        %1713 = vadd.xlane.f32.xlu0 %v1712
        %v1714 = vpop.xlane.xlu0 %1713
        %v1715 = vsel %vm672, %v1673, 0.0
        %1716 = vadd.xlane.f32.xlu0 %v1715
        %v1717 = vpop.xlane.xlu0 %1716
        %v1718 = vsel %vm672, %v1674, 0.0
        %1719 = vadd.xlane.f32.xlu0 %v1718
        %v1720 = vpop.xlane.xlu0 %1719
        %v1721 = vsel %vm672, %v1675, 0.0
        %1722 = vadd.xlane.f32.xlu0 %v1721
        %v1723 = vpop.xlane.xlu0 %1722
        %v1724 = vsel %vm672, %v1676, 0.0
        %1725 = vadd.xlane.f32.xlu0 %v1724
        %v1726 = vpop.xlane.xlu0 %1725
        %v1727 = vsel %vm672, %v1677, 0.0
        %1728 = vadd.xlane.f32.xlu0 %v1727
        %v1729 = vpop.xlane.xlu0 %1728
        %v1730 = vsel %vm672, %v1678, 0.0
        %1731 = vadd.xlane.f32.xlu0 %v1730
        %v1732 = vpop.xlane.xlu0 %1731
        %v1733 = vsel %vm672, %v1679, 0.0
        %1734 = vadd.xlane.f32.xlu0 %v1733
        %v1735 = vpop.xlane.xlu0 %1734
        %v1736 = vsel %vm672, %v1680, 0.0
        %1737 = vadd.xlane.f32.xlu0 %v1736
        %v1738 = vpop.xlane.xlu0 %1737
        %v1739 = vsel %vm672, %v1681, 0.0
        %1740 = vadd.xlane.f32.xlu0 %v1739
        %v1741 = vpop.xlane.xlu0 %1740
        %v1742 = vsel %vm672, %v1682, 0.0
        %1743 = vadd.xlane.f32.xlu0 %v1742
        %v1744 = vpop.xlane.xlu0 %1743
        %v1745 = vsel %vm672, %v1683, 0.0
        %1746 = vadd.xlane.f32.xlu0 %v1745
        %v1747 = vpop.xlane.xlu0 %1746
        %v1748 = vsel %vm672, %v1684, 0.0
        %1749 = vadd.xlane.f32.xlu0 %v1748
        %v1750 = vpop.xlane.xlu0 %1749
        %v1751 = vsel %vm672, %v1685, 0.0
        %1752 = vadd.xlane.f32.xlu0 %v1751
        %v1753 = vpop.xlane.xlu0 %1752
        %v1754 = vsel %vm672, %v1686, 0.0
        %1755 = vadd.xlane.f32.xlu0 %v1754
        %v1756 = vpop.xlane.xlu0 %1755
        %v1757 = vsel %vm672, %v1687, 0.0
        %1758 = vadd.xlane.f32.xlu0 %v1757
        %v1759 = vpop.xlane.xlu0 %1758
        %v1760 = vsel %vm672, %v1688, 0.0
        %1761 = vadd.xlane.f32.xlu0 %v1760
        %v1762 = vpop.xlane.xlu0 %1761
        %v1763 = vsel %vm672, %v1689, 0.0
        %1764 = vadd.xlane.f32.xlu0 %v1763
        %v1765 = vpop.xlane.xlu0 %1764
        %v1766 = vsel %vm672, %v1690, 0.0
        %1767 = vadd.xlane.f32.xlu0 %v1766
        %v1768 = vpop.xlane.xlu0 %1767
        %v1769 = vsel %vm672, %v1691, 0.0
        %1770 = vadd.xlane.f32.xlu0 %v1769
        %v1771 = vpop.xlane.xlu0 %1770
        %v1772 = vsel %vm672, %v1692, 0.0
        %1773 = vadd.xlane.f32.xlu0 %v1772
        %v1774 = vpop.xlane.xlu0 %1773
        %v1775 = vsel %vm672, %v1693, 0.0
        %1776 = vadd.xlane.f32.xlu0 %v1775
        %v1777 = vpop.xlane.xlu0 %1776
        %v1778 = vsel %vm672, %v1694, 0.0
        %1779 = vadd.xlane.f32.xlu0 %v1778
        %v1780 = vpop.xlane.xlu0 %1779
        %v1781 = vsel %vm672, %v1695, 0.0
        %1782 = vadd.xlane.f32.xlu0 %v1781
        %v1783 = vpop.xlane.xlu0 %1782
        %v1784 = vsel %vm672, %v1696, 0.0
        %1785 = vadd.xlane.f32.xlu0 %v1784
        %v1786 = vpop.xlane.xlu0 %1785
        %v1787 = vsel %vm672, %v1697, 0.0
        %1788 = vadd.xlane.f32.xlu0 %v1787
        %v1789 = vpop.xlane.xlu0 %1788
        %v1790 = vsel %vm672, %v1698, 0.0
        %1791 = vadd.xlane.f32.xlu0 %v1790
        %v1792 = vpop.xlane.xlu0 %1791
        %v1793 = vsel %vm672, %v1699, 0.0
        %1794 = vadd.xlane.f32.xlu0 %v1793
        %v1795 = vpop.xlane.xlu0 %1794
        %v1796 = vmul.f32 %v1702, %v1171
        %v1797 = vmul.f32 %v1705, %v1171
        %v1798 = vmul.f32 %v1708, %v1171
        %v1799 = vmul.f32 %v1711, %v1171
        %v1800 = vmul.f32 %v1714, %v1171
        %v1801 = vmul.f32 %v1717, %v1171
        %v1802 = vmul.f32 %v1720, %v1171
        %v1803 = vmul.f32 %v1723, %v1171
        %v1804 = vmul.f32 %v1726, %v1171
        %v1805 = vmul.f32 %v1729, %v1171
        %v1806 = vmul.f32 %v1732, %v1171
        %v1807 = vmul.f32 %v1735, %v1171
        %v1808 = vmul.f32 %v1738, %v1171
        %v1809 = vmul.f32 %v1741, %v1171
        %v1810 = vmul.f32 %v1744, %v1171
        %v1811 = vmul.f32 %v1747, %v1171
        %v1812 = vmul.f32 %v1750, %v1171
        %v1813 = vmul.f32 %v1753, %v1171
        %v1814 = vmul.f32 %v1756, %v1171
        %v1815 = vmul.f32 %v1759, %v1171
        %v1816 = vmul.f32 %v1762, %v1171
        %v1817 = vmul.f32 %v1765, %v1171
        %v1818 = vmul.f32 %v1768, %v1171
        %v1819 = vmul.f32 %v1771, %v1171
        %v1820 = vmul.f32 %v1774, %v1171
        %v1821 = vmul.f32 %v1777, %v1171
        %v1822 = vmul.f32 %v1780, %v1171
        %v1823 = vmul.f32 %v1783, %v1171
        %v1824 = vmul.f32 %v1786, %v1171
        %v1825 = vmul.f32 %v1789, %v1171
        %v1826 = vmul.f32 %v1792, %v1171
        %v1827 = vmul.f32 %v1795, %v1171
        %v1828 = vadd.f32 %v1796, 1e-05
        %v1829 = vadd.f32 %v1797, 1e-05
        %v1830 = vadd.f32 %v1798, 1e-05
        %v1831 = vadd.f32 %v1799, 1e-05
        %v1832 = vadd.f32 %v1800, 1e-05
        %v1833 = vadd.f32 %v1801, 1e-05
        %v1834 = vadd.f32 %v1802, 1e-05
        %v1835 = vadd.f32 %v1803, 1e-05
        %v1836 = vadd.f32 %v1804, 1e-05
        %v1837 = vadd.f32 %v1805, 1e-05
        %v1838 = vadd.f32 %v1806, 1e-05
        %v1839 = vadd.f32 %v1807, 1e-05
        %v1840 = vadd.f32 %v1808, 1e-05
        %v1841 = vadd.f32 %v1809, 1e-05
        %v1842 = vadd.f32 %v1810, 1e-05
        %v1843 = vadd.f32 %v1811, 1e-05
        %v1844 = vadd.f32 %v1812, 1e-05
        %v1845 = vadd.f32 %v1813, 1e-05
        %v1846 = vadd.f32 %v1814, 1e-05
        %v1847 = vadd.f32 %v1815, 1e-05
        %v1848 = vadd.f32 %v1816, 1e-05
        %v1849 = vadd.f32 %v1817, 1e-05
        %v1850 = vadd.f32 %v1818, 1e-05
        %v1851 = vadd.f32 %v1819, 1e-05
        %v1852 = vadd.f32 %v1820, 1e-05
        %v1853 = vadd.f32 %v1821, 1e-05
        %v1854 = vadd.f32 %v1822, 1e-05
        %v1855 = vadd.f32 %v1823, 1e-05
        %v1856 = vadd.f32 %v1824, 1e-05
        %v1857 = vadd.f32 %v1825, 1e-05
        %v1858 = vadd.f32 %v1826, 1e-05
        %v1859 = vadd.f32 %v1827, 1e-05
        %v1860 = vrsqrt.pop %v1828
        %v1861 = vrsqrt.pop %v1829
        %v1862 = vrsqrt.pop %v1830
        %v1863 = vrsqrt.pop %v1831
        %v1864 = vrsqrt.pop %v1832
        %v1865 = vrsqrt.pop %v1833
        %v1866 = vrsqrt.pop %v1834
        %v1867 = vrsqrt.pop %v1835
        %v1868 = vrsqrt.pop %v1836
        %v1869 = vrsqrt.pop %v1837
        %v1870 = vrsqrt.pop %v1838
        %v1871 = vrsqrt.pop %v1839
        %v1872 = vrsqrt.pop %v1840
        %v1873 = vrsqrt.pop %v1841
        %v1874 = vrsqrt.pop %v1842
        %v1875 = vrsqrt.pop %v1843
        %v1876 = vrsqrt.pop %v1844
        %v1877 = vrsqrt.pop %v1845
        %v1878 = vrsqrt.pop %v1846
        %v1879 = vrsqrt.pop %v1847
        %v1880 = vrsqrt.pop %v1848
        %v1881 = vrsqrt.pop %v1849
        %v1882 = vrsqrt.pop %v1850
        %v1883 = vrsqrt.pop %v1851
        %v1884 = vrsqrt.pop %v1852
        %v1885 = vrsqrt.pop %v1853
        %v1886 = vrsqrt.pop %v1854
        %v1887 = vrsqrt.pop %v1855
        %v1888 = vrsqrt.pop %v1856
        %v1889 = vrsqrt.pop %v1857
        %v1890 = vrsqrt.pop %v1858
        %v1891 = vrsqrt.pop %v1859
        %v1892 = vmul.f32 %v1542, %v1860
        %v1893 = vmul.f32 %v1545, %v1861
        %v1894 = vmul.f32 %v1550, %v1862
        %v1895 = vmul.f32 %v1553, %v1863
        %v1896 = vmul.f32 %v1558, %v1864
        %v1897 = vmul.f32 %v1561, %v1865
        %v1898 = vmul.f32 %v1566, %v1866
        %v1899 = vmul.f32 %v1569, %v1867
        %v1900 = vmul.f32 %v1574, %v1868
        %v1901 = vmul.f32 %v1577, %v1869
        %v1902 = vmul.f32 %v1582, %v1870
        %v1903 = vmul.f32 %v1585, %v1871
        %v1904 = vmul.f32 %v1590, %v1872
        %v1905 = vmul.f32 %v1593, %v1873
        %v1906 = vmul.f32 %v1598, %v1874
        %v1907 = vmul.f32 %v1601, %v1875
        %v1908 = vmul.f32 %v1606, %v1876
        %v1909 = vmul.f32 %v1609, %v1877
        %v1910 = vmul.f32 %v1614, %v1878
        %v1911 = vmul.f32 %v1617, %v1879
        %v1912 = vmul.f32 %v1622, %v1880
        %v1913 = vmul.f32 %v1625, %v1881
        %v1914 = vmul.f32 %v1630, %v1882
        %v1915 = vmul.f32 %v1633, %v1883
        %v1916 = vmul.f32 %v1638, %v1884
        %v1917 = vmul.f32 %v1641, %v1885
        %v1918 = vmul.f32 %v1646, %v1886
        %v1919 = vmul.f32 %v1649, %v1887
        %v1920 = vmul.f32 %v1654, %v1888
        %v1921 = vmul.f32 %v1657, %v1889
        %v1922 = vmul.f32 %v1662, %v1890
        %v1923 = vmul.f32 %v1665, %v1891
        %v1924 = vld [vmem:[%s3 + $0x4] sm:$0x1]
        %v1925 = vlaneseq
        %v1926 = vshrl.u32 %v1925, 7
        %v1927 = vsub.s32 0, %v1926
        %v1928 = vrot.slane %v1924, %v1927
        %v1929 = vmul.f32 %v1892, %v1928
        %v1930 = vmul.f32 %v1893, %v1928
        %v1931 = vmul.f32 %v1894, %v1928
        %v1932 = vmul.f32 %v1895, %v1928
        %v1933 = vmul.f32 %v1896, %v1928
        %v1934 = vmul.f32 %v1897, %v1928
        %v1935 = vmul.f32 %v1898, %v1928
        %v1936 = vmul.f32 %v1899, %v1928
        %v1937 = vmul.f32 %v1900, %v1928
        %v1938 = vmul.f32 %v1901, %v1928
        %v1939 = vmul.f32 %v1902, %v1928
        %v1940 = vmul.f32 %v1903, %v1928
        %v1941 = vmul.f32 %v1904, %v1928
        %v1942 = vmul.f32 %v1905, %v1928
        %v1943 = vmul.f32 %v1906, %v1928
        %v1944 = vmul.f32 %v1907, %v1928
        %v1945 = vmul.f32 %v1908, %v1928
        %v1946 = vmul.f32 %v1909, %v1928
        %v1947 = vmul.f32 %v1910, %v1928
        %v1948 = vmul.f32 %v1911, %v1928
        %v1949 = vmul.f32 %v1912, %v1928
        %v1950 = vmul.f32 %v1913, %v1928
        %v1951 = vmul.f32 %v1914, %v1928
        %v1952 = vmul.f32 %v1915, %v1928
        %v1953 = vmul.f32 %v1916, %v1928
        %v1954 = vmul.f32 %v1917, %v1928
        %v1955 = vmul.f32 %v1918, %v1928
        %v1956 = vmul.f32 %v1919, %v1928
        %v1957 = vmul.f32 %v1920, %v1928
        %v1958 = vmul.f32 %v1921, %v1928
        %v1959 = vmul.f32 %v1922, %v1928
        %v1960 = vmul.f32 %v1923, %v1928
        %v1961 = vld [vmem:[%s3 + $0x5] sm:$0x1]
        %v1962 = vlaneseq
        %v1963 = vshrl.u32 %v1962, 7
        %v1964 = vsub.s32 0, %v1963
        %v1965 = vrot.slane %v1961, %v1964
        %v1966 = vadd.f32 %v1929, %v1965
        %v1967 = vadd.f32 %v1930, %v1965
        %v1968 = vadd.f32 %v1931, %v1965
        %v1969 = vadd.f32 %v1932, %v1965
        %v1970 = vadd.f32 %v1933, %v1965
        %v1971 = vadd.f32 %v1934, %v1965
        %v1972 = vadd.f32 %v1935, %v1965
        %v1973 = vadd.f32 %v1936, %v1965
        %v1974 = vadd.f32 %v1937, %v1965
        %v1975 = vadd.f32 %v1938, %v1965
        %v1976 = vadd.f32 %v1939, %v1965
        %v1977 = vadd.f32 %v1940, %v1965
        %v1978 = vadd.f32 %v1941, %v1965
        %v1979 = vadd.f32 %v1942, %v1965
        %v1980 = vadd.f32 %v1943, %v1965
        %v1981 = vadd.f32 %v1944, %v1965
        %v1982 = vadd.f32 %v1945, %v1965
        %v1983 = vadd.f32 %v1946, %v1965
        %v1984 = vadd.f32 %v1947, %v1965
        %v1985 = vadd.f32 %v1948, %v1965
        %v1986 = vadd.f32 %v1949, %v1965
        %v1987 = vadd.f32 %v1950, %v1965
        %v1988 = vadd.f32 %v1951, %v1965
        %v1989 = vadd.f32 %v1952, %v1965
        %v1990 = vadd.f32 %v1953, %v1965
        %v1991 = vadd.f32 %v1954, %v1965
        %v1992 = vadd.f32 %v1955, %v1965
        %v1993 = vadd.f32 %v1956, %v1965
        %v1994 = vadd.f32 %v1957, %v1965
        %v1995 = vadd.f32 %v1958, %v1965
        %v1996 = vadd.f32 %v1959, %v1965
        %v1997 = vadd.f32 %v1960, %v1965
        %v1998 = vmax.f32 %v1966, 0.0
        %v1999 = vmax.f32 %v1967, 0.0
        %v2000 = vmax.f32 %v1968, 0.0
        %v2001 = vmax.f32 %v1969, 0.0
        %v2002 = vmax.f32 %v1970, 0.0
        %v2003 = vmax.f32 %v1971, 0.0
        %v2004 = vmax.f32 %v1972, 0.0
        %v2005 = vmax.f32 %v1973, 0.0
        %v2006 = vmax.f32 %v1974, 0.0
        %v2007 = vmax.f32 %v1975, 0.0
        %v2008 = vmax.f32 %v1976, 0.0
        %v2009 = vmax.f32 %v1977, 0.0
        %v2010 = vmax.f32 %v1978, 0.0
        %v2011 = vmax.f32 %v1979, 0.0
        %v2012 = vmax.f32 %v1980, 0.0
        %v2013 = vmax.f32 %v1981, 0.0
        %v2014 = vmax.f32 %v1982, 0.0
        %v2015 = vmax.f32 %v1983, 0.0
        %v2016 = vmax.f32 %v1984, 0.0
        %v2017 = vmax.f32 %v1985, 0.0
        %v2018 = vmax.f32 %v1986, 0.0
        %v2019 = vmax.f32 %v1987, 0.0
        %v2020 = vmax.f32 %v1988, 0.0
        %v2021 = vmax.f32 %v1989, 0.0
        %v2022 = vmax.f32 %v1990, 0.0
        %v2023 = vmax.f32 %v1991, 0.0
        %v2024 = vmax.f32 %v1992, 0.0
        %v2025 = vmax.f32 %v1993, 0.0
        %v2026 = vmax.f32 %v1994, 0.0
        %v2027 = vmax.f32 %v1995, 0.0
        %v2028 = vmax.f32 %v1996, 0.0
        %v2029 = vmax.f32 %v1997, 0.0
        %v2030 = vld [vmem:[%s3 + $0x6] sm:$0x1]
        %v2031 = vpack.c.bf16 %v2030, %v2030
        %v2032 = vpack.c.bf16 %v1999, %v1998
        %v2033 = vpack.c.bf16 %v2001, %v2000
        %v2034 = vpack.c.bf16 %v2003, %v2002
        %v2035 = vpack.c.bf16 %v2005, %v2004
        %v2036 = vpack.c.bf16 %v2007, %v2006
        %v2037 = vpack.c.bf16 %v2009, %v2008
        %v2038 = vpack.c.bf16 %v2011, %v2010
        %v2039 = vpack.c.bf16 %v2013, %v2012
        %v2040 = vpack.c.bf16 %v2015, %v2014
        %v2041 = vpack.c.bf16 %v2017, %v2016
        %v2042 = vpack.c.bf16 %v2019, %v2018
        %v2043 = vpack.c.bf16 %v2021, %v2020
        %v2044 = vpack.c.bf16 %v2023, %v2022
        %v2045 = vpack.c.bf16 %v2025, %v2024
        %v2046 = vpack.c.bf16 %v2027, %v2026
        %v2047 = vpack.c.bf16 %v2029, %v2028
        %v2048 = vld [vmem:[%s3 + $0x7] sm:$0x1]
        %2050 = vset.pattern.permute.xlu0 0
        %2051 = vperm.xlu0 %2050, %v2048
        %v2052 = vpop.permute.xlu0 %2051
        %v2055 = vsel %vm672, %v2031, 0
        %v2058 = vsel %vm672, %v2032, 0
        %v2061 = vsel %vm672, %v2033, 0
        %v2064 = vsel %vm672, %v2034, 0
        %v2067 = vsel %vm672, %v2035, 0
        %v2070 = vsel %vm672, %v2036, 0
        %v2073 = vsel %vm672, %v2037, 0
        %v2076 = vsel %vm672, %v2038, 0
        %v2079 = vsel %vm672, %v2039, 0
        %v2082 = vsel %vm672, %v2040, 0
        %v2085 = vsel %vm672, %v2041, 0
        %v2088 = vsel %vm672, %v2042, 0
        %v2091 = vsel %vm672, %v2043, 0
        %v2094 = vsel %vm672, %v2044, 0
        %v2097 = vsel %vm672, %v2045, 0
        %v2100 = vsel %vm672, %v2046, 0
        %v2103 = vsel %vm672, %v2047, 0
        %2105 = vmatprep.subr.bf16.mxu0 0
        %2106 = vmatpush1.bf16.xpose.msra.mxu0 %v2058
        %2107 = vmatprep.subr.bf16.mxu0 0
        %2108 = vmatpush1.bf16.xpose.msra.mxu0 %v2061
        %2109 = vmatprep.subr.bf16.mxu0 0
        %2110 = vmatpush1.bf16.xpose.msra.mxu0 %v2064
        %2111 = vmatprep.subr.bf16.mxu0 0
        %2112 = vmatpush1.bf16.xpose.msra.mxu0 %v2067
        %2113 = vmatprep.subr.bf16.mxu0 0
        %2114 = vmatpush1.bf16.xpose.msra.mxu0 %v2070
        %2115 = vmatprep.subr.bf16.mxu0 0
        %2116 = vmatpush1.bf16.xpose.msra.mxu0 %v2073
        %2117 = vmatprep.subr.bf16.mxu0 0
        %2118 = vmatpush1.bf16.xpose.msra.mxu0 %v2076
        %2119 = vmatprep.subr.bf16.mxu0 0
        %2120 = vmatpush1.bf16.xpose.msra.mxu0 %v2079
        %2121 = vmatprep.subr.bf16.mxu0 0
        %2122 = vmatpush1.bf16.xpose.msra.mxu0 %v2082
        %2123 = vmatprep.subr.bf16.mxu0 0
        %2124 = vmatpush1.bf16.xpose.msra.mxu0 %v2085
        %2125 = vmatprep.subr.bf16.mxu0 0
        %2126 = vmatpush1.bf16.xpose.msra.mxu0 %v2088
        %2127 = vmatprep.subr.bf16.mxu0 0
        %2128 = vmatpush1.bf16.xpose.msra.mxu0 %v2091
        %2129 = vmatprep.subr.bf16.mxu0 0
        %2130 = vmatpush1.bf16.xpose.msra.mxu0 %v2094
        %2131 = vmatprep.subr.bf16.mxu0 0
        %2132 = vmatpush1.bf16.xpose.msra.mxu0 %v2097
        %2133 = vmatprep.subr.bf16.mxu0 0
        %2134 = vmatpush1.bf16.xpose.msra.mxu0 %v2100
        %2135 = vmatprep.subr.bf16.mxu0 0
        %2136 = vmatpush1.bf16.xpose.msra.mxu0 %v2103
        %2137 = vmatprep.mubr.bf16.mxu0 0
        %2138 = vmatmul.mubr.bf16.gmra.mrb[0].mxu0 %v2055
        %v2139 = vpop.f32.mrb[0].mxu0
        %v2140 = vadd.f32 %v2052, %v2139
        %v2141 = vpop.f32.mrb[0].mxu0
        %v2142 = vadd.f32 %v2052, %v2141
        %v2143 = vpop.f32.mrb[0].mxu0
        %v2144 = vpop.f32.mrb[0].mxu0
        %2145 = vdwg.mxu0
        %v2146 = vxor.u32 %v2140, 2147483648
        %v2147 = vxor.u32 %v2142, 2147483648
        %v2148 = vmul.f32 %v2146, 1.442695
        %v2149 = vpow.pop %v2148
        %v2150 = vmul.f32 %v2147, 1.442695
        %v2151 = vpow.pop %v2150
        %v2152 = vadd.f32 %v2149, 1.0
        %v2153 = vadd.f32 %v2151, 1.0
        %v2154 = vrcp.pop %v2152
        %v2155 = vmul.f32 1.0, %v2154
        %v2156 = vrcp.pop %v2153
        %v2157 = vmul.f32 1.0, %v2156
        %v2160 = vcombine.low %v2155, %v2157
        %v2162 = vunpack.c.l.s4 1966171168
        %v2163 = vunpack.c.0.s8 %v2162
        %v2164 = vlaneseq
        %v2165 = vshrl.u32 %v2164, 7
        %v2166 = vsub.s32 %v2163, %v2165
        %v2167 = vrot.slane %v2160, %v2166
        %v2169 = vunpack.c.l.s4 1966171168
        %v2170 = vunpack.c.0.s8 %v2169
        %v2171 = vlaneseq
        %v2172 = vshrl.u32 %v2171, 7
        %v2173 = vsub.s32 %v2170, %v2172
        %v2174 = vrot.slane %v2167, %v2173
        %v2176 = vlaneseq
        %vm2177 = vcmp.ge.s32.totalorder %v2176, 0
        %vm2178 = vcmp.lt.s32.totalorder %v2176, 256
        %vm2179 = vmand %vm2177, %vm2178
        %2180 = vst.msk [vmem:[%s193] sm:$0x3] %vm2179, %v2174
        %s2181 = sand.u32 %s115, 1
        %s2182 = scalar_lea.sflag [#allocation3], %s2181
        %s2183 = sand.u32 %s115, 1
        %s2184 = smul.addr %s2183, 2
        %s2185 = scalar_lea.vmem [#allocation2], %s2184
        // Predicated region
        $region37: #{forward_pallas.1} parent=35 // pred_check
          %p2186 = pneg %p125
        $region38: #{forward_pallas.1} parent=35 // pred_check_branch
          %2188 = sbr.rel (%p2186) target = $region40
        $region39: #{forward_pallas.1} parent=35 // pred_region
          %s2189 = smul.u32 2, %s18
          %s2191 = ssub.s32 32, 32
          %2192 = vsyncadd %s2182, %s2191
          %s2193 = smul.addr %s2189, 16
          %s2194 = scalar_lea.hbm %s4, %s2193
          %s2196 = sshll.u32 %s2185, 4
          %s2197 = int_to_ptr.vmem [resolvable:$true] %s2196
          %2199 = dma.vmem_to_hbm [thread:$0]  %s2197, 32, %s2194, %s2182
        $region40: #{forward_pallas.1} parent=35 // pred_fallthru
          _
      $region36: #{forward_pallas.1} parent=5 // pred_fallthru
        _
      %p2200 = scmp.le.s32.totalorder 2, %s13
      // Predicated region
      $region41: #{forward_pallas.1} parent=5 // pred_check
        %p2201 = pneg %p2200
      $region42: #{forward_pallas.1} parent=5 // pred_check_branch
        %2203 = sbr.rel (%p2201) target = $region44
      $region43: #{forward_pallas.1} parent=5 // pred_region
        %s2204 = ssub.s32 %s13, 2
        // Predicated region
        $region45: #{forward_pallas.1} parent=43 // pred_check
          %p2205 = pneg %p131
        $region46: #{forward_pallas.1} parent=43 // pred_check_branch
          %2207 = sbr.rel (%p2205) target = $region48
        $region47: #{forward_pallas.1} parent=43 // pred_region
          %s2208 = sand.u32 %s116, 1
          %s2209 = scalar_lea.sflag [#allocation3], %s2208
          %s2210 = sand.u32 %s116, 1
          %s2211 = smul.addr %s2210, 2
          %s2212 = scalar_lea.vmem [#allocation2], %s2211
          %2213 = dma.done %s2209, 32
        $region48: #{forward_pallas.1} parent=43 // pred_fallthru
          _
      $region44: #{forward_pallas.1} parent=5 // pred_fallthru
        _
    $region6: #{forward_pallas.1} parent=1 // loop_footer
      %s17 = sadd.s32 1, %s13
    $region7: #{forward_pallas.1} parent=1 // loop_footer_branch
      %12 = sbr.rel target = $region3
    $region8: #{forward_pallas.1} parent=1 // loop_exit
      _
    %2214 = vsyncpa [#allocation3], 1
    %s2215 = scalar_lea.sflag [#allocation3], 1
    %2216 = vsyncpa %s2215, 1

</llo_original>
